<compile_context>
chip_gen: v5e
topology: v5e:2x2
jax: 0.10.0
libtpu: 0.0.40
codegen_flags: <defaults>
</compile_context>

<pallas_src>
import jax
import jax.numpy as jnp
from jax.experimental import pallas as pl
from jax.experimental.pallas import tpu as pltpu

N, C, H, W = 2, 4, 16, 16
KH = KW = 5
PH = PW = 2
EPS = 1e-5

NC = N * C               # 8    sublane axis: rows ordered (n, c)
HW = H * W               # 256  lane axis:  lanes ordered (h, w)  -> lane-dense
KDIM = KH * KW * NC      # 200  im2col contraction depth
KPAD = 256               # padded K so both MXU operands are (.,128)-aligned
NPAIR = (KH * KW + 1) // 2   # 13 tap-pairs -> every scratch store is a full 16-row tile

# packed-params row layout (single f32 (P_ROWS, KPAD) operand)
W1_ROW = 0
W2_ROW = NC
MASK_ROW = 2 * NC
BN_ROW = MASK_ROW + KH * KW * NC     # 216
P_ROWS = BN_ROW + NC                 # 224


def _resblock_kernel(x_ref, p_ref, o_ref, s_ref):
    """Fused ResBlock2D forward on one (NC, HW) = (8, 256) lane-dense slab.

    x_ref : (NC, HW)       f32 input slab (one grid step)
    p_ref : (P_ROWS, KPAD) f32 packed params: [W1 | W2 | 25 masks | BN], VMEM-resident
    o_ref : (NC, HW)       f32 output slab
    s_ref : (KPAD, HW)     bf16 im2col scratch; tap t lives at rows t*NC:(t+1)*NC
    """
    x = x_ref[...]

    # Zero the padded K tail (rows 208..255; rows 200..207 are rewritten by im2col).
    # Unconditional (cheap) so it is correct even when the parallel grid axis is
    # sharded across cores and this core never runs grid step 0.
    s_ref[2 * NPAIR * NC:KPAD, :] = jnp.zeros((KPAD - 2 * NPAIR * NC, HW), jnp.bfloat16)

    # bf16 matmul operands (f32 accumulation); params DMA'd once as f32, cast here.
    w1 = p_ref[W1_ROW:W1_ROW + NC, :].astype(jnp.bfloat16)      # (NC, KPAD)
    w2 = p_ref[W2_ROW:W2_ROW + NC, :].astype(jnp.bfloat16)
    g1 = p_ref[BN_ROW:BN_ROW + NC, 0:1]                         # (NC, 1), per-image dup
    b1 = p_ref[BN_ROW:BN_ROW + NC, 1:2]
    g2 = p_ref[BN_ROW:BN_ROW + NC, 2:3]
    b2 = p_ref[BN_ROW:BN_ROW + NC, 3:4]

    def im2col(v):
        # 25 zero-padded 'same' shifts: lane roll (XLU) * precomputed 0/1 mask (VPU),
        # written bf16 two taps at a time so every store is a full, unmasked
        # 16-row x 128-lane tile (f32 8-row concat at a vreg boundary is free).
        for p in range(NPAIR):
            halves = []
            for t in (2 * p, 2 * p + 1):
                if t >= KH * KW:                       # odd tap count -> zero pad block
                    halves.append(jnp.zeros((NC, HW), jnp.float32))
                    continue
                dh, dw = t // KW - PH, t % KW - PW
                s = dh * W + dw
                shifted = v if s == 0 else pltpu.roll(v, (-s) % HW, axis=1)
                if dh == 0 and dw == 0:                # center tap: mask is all-ones
                    halves.append(shifted)
                else:
                    m = p_ref[MASK_ROW + t * NC:MASK_ROW + (t + 1) * NC, :]
                    halves.append(shifted * m)
            s_ref[2 * p * NC:(2 * p + 2) * NC, :] = (
                jnp.concatenate(halves, axis=0).astype(jnp.bfloat16))

    def channel_sum(v):
        # per-channel sum over (N, H, W), returned already duplicated per image:
        # cross-image reduction via a sublane roll (no concatenates / row slicing).
        t = v
        for n in range(1, N):
            t = t + pltpu.roll(v, n * C, axis=0)
        return jnp.sum(t, axis=1, keepdims=True)                 # (NC, 1)

    def batchnorm(acc, gamma, beta):
        # training-mode BN, biased variance, two-pass (mean, then centered var) in f32.
        cnt = float(N * H * W)
        mean = channel_sum(acc) / cnt                            # (NC, 1)
        cen = acc - mean
        var = channel_sum(cen * cen) / cnt
        scale = gamma * jax.lax.rsqrt(var + EPS)
        return cen * scale + beta

    # stage 1: conv -> BN -> ReLU   (conv bias omitted: cancels against batch mean)
    im2col(x)
    a1 = jnp.dot(w1, s_ref[...], preferred_element_type=jnp.float32)
    h1 = jnp.maximum(batchnorm(a1, g1, b1), 0.0)

    # stage 2: conv -> BN, then residual add
    im2col(h1)
    a2 = jnp.dot(w2, s_ref[...], preferred_element_type=jnp.float32)
    o_ref[...] = batchnorm(a2, g2, b2) + x


def pack_params(w1, b1, g1, be1, w2, b2, g2, be2):
    """Repack PyTorch-layout params once (outside the forward jit) into a single
    (P_ROWS, KPAD) f32 operand: [W1 | W2 | 25 pre-broadcast boundary masks | BN].

    Conv biases are intentionally dropped: with training-mode BatchNorm (batch
    statistics) a per-channel constant added before BN cancels exactly against the
    batch mean (the reference below keeps them and still matches).
    """
    del b1, b2

    def wmat(w):  # w: (Cout, Cin, KH, KW) PyTorch layout -> (NC, KPAD) im2col matrix
        taps = jnp.transpose(w.astype(jnp.float32), (2, 3, 0, 1)).reshape(KH * KW, C, C)
        blk = jnp.zeros((KH * KW, NC, NC), jnp.float32)
        for n in range(N):  # batch-block-diagonal so one matmul handles every image
            blk = blk.at[:, n * C:(n + 1) * C, n * C:(n + 1) * C].set(taps)
        wm = jnp.transpose(blk, (1, 0, 2)).reshape(NC, KDIM)            # (8, 200)
        return jnp.pad(wm, ((0, 0), (0, KPAD - KDIM)))                  # (8, 256)

    # 25 'same'-conv boundary masks, precomputed on host and pre-broadcast to NC rows
    # (the iota/compare/and mask math is removed from the kernel entirely).
    hh, ww = jnp.meshgrid(jnp.arange(H), jnp.arange(W), indexing="ij")
    hh = hh.reshape(1, HW)
    ww = ww.reshape(1, HW)
    masks = []
    for t in range(KH * KW):
        dh, dw = t // KW - PH, t % KW - PW
        valid = ((hh >= max(0, -dh)) & (hh < min(H, H - dh)) &
                 (ww >= max(0, -dw)) & (ww < min(W, W - dw)))
        masks.append(jnp.broadcast_to(valid.astype(jnp.float32), (NC, HW)))
    maskm = jnp.concatenate(masks, axis=0)                              # (200, 256)

    # BN affine params pre-duplicated per image: row n*C+c -> [g1, b1, g2, b2] of ch c.
    bn = jnp.stack([g1, be1, g2, be2], axis=1).astype(jnp.float32)      # (C, 4)
    bn = jnp.tile(bn, (N, 1))                                           # (NC, 4)
    bn = jnp.pad(bn, ((0, 0), (0, KPAD - 4)))                           # (NC, 256)

    return jnp.concatenate([wmat(w1), wmat(w2), maskm, bn], axis=0)     # (224, 256)


@jax.jit
def resblock2d(x, packed):
    """x: (..., N, C, H, W); leading dims are independent ResBlock applications
    (each normalized over its own (N, H, W), i.e. the module applied per slab).
    Returns the same shape."""
    lead = x.shape[:-4]
    G = 1
    for d in lead:
        G *= int(d)
    xg = x.astype(jnp.float32).reshape(G, NC, HW)   # free reshape of contiguous NCHW

    y = pl.pallas_call(
        _resblock_kernel,
        out_shape=jax.ShapeDtypeStruct((G, NC, HW), jnp.float32),
        grid=(G,),
        in_specs=[
            pl.BlockSpec((None, NC, HW), lambda g: (g, 0, 0)),     # per-slab input
            pl.BlockSpec((P_ROWS, KPAD), lambda g: (0, 0)),        # resident params
        ],
        out_specs=pl.BlockSpec((None, NC, HW), lambda g: (g, 0, 0)),
        scratch_shapes=[pltpu.VMEM((KPAD, HW), jnp.bfloat16)],
        compiler_params=pltpu.CompilerParams(
            dimension_semantics=("parallel",),        # shards slabs across v7x's 2 TCs
            vmem_limit_bytes=16 * 1024 * 1024),       # explicit, huge headroom on v7x
    )(xg, packed)
    return y.reshape(x.shape)


def _reference(x, params, bf16_operands=False):
    """Pure-JAX reference with the PyTorch module's semantics (incl. conv bias).
    With bf16_operands=True it rounds the conv inputs/weights to bf16 (f32 accumulate),
    matching the kernel's mixed-precision im2col/matmul path."""
    w1, b1, g1, be1, w2, b2, g2, be2 = params
    rnd = (lambda a: a.astype(jnp.bfloat16).astype(jnp.float32)) if bf16_operands \
        else (lambda a: a)

    def conv(v, w, b):
        y = jax.lax.conv_general_dilated(
            rnd(v), rnd(w), window_strides=(1, 1), padding=((PH, PH), (PW, PW)),
            dimension_numbers=("NCHW", "OIHW", "NCHW"),
            precision=jax.lax.Precision.HIGHEST)
        return y + b.reshape(1, C, 1, 1)

    def bn(v, g, be):
        m = v.mean(axis=(0, 2, 3), keepdims=True)
        var = ((v - m) ** 2).mean(axis=(0, 2, 3), keepdims=True)
        return ((v - m) * jax.lax.rsqrt(var + EPS) * g.reshape(1, C, 1, 1)
                + be.reshape(1, C, 1, 1))

    h = jnp.maximum(bn(conv(x, w1, b1), g1, be1), 0.0)
    return bn(conv(h, w2, b2), g2, be2) + x


if __name__ == "__main__":
    key = jax.random.PRNGKey(0)
    kx, kxg, kw1, kb1, kw2, kb2, kg1, kbe1, kg2, kbe2 = jax.random.split(key, 10)

    bound = 1.0 / float(C * KH * KW) ** 0.5            # ~PyTorch conv init scale
    w1 = jax.random.uniform(kw1, (C, C, KH, KW), jnp.float32, -bound, bound)
    b1 = jax.random.uniform(kb1, (C,), jnp.float32, -bound, bound)
    w2 = jax.random.uniform(kw2, (C, C, KH, KW), jnp.float32, -bound, bound)
    b2 = jax.random.uniform(kb2, (C,), jnp.float32, -bound, bound)
    # non-trivial BN affine params to exercise the full path (fresh module: gamma=1, beta=0)
    g1 = jax.random.uniform(kg1, (C,), jnp.float32, 0.5, 1.5)
    be1 = jax.random.uniform(kbe1, (C,), jnp.float32, -0.5, 0.5)
    g2 = jax.random.uniform(kg2, (C,), jnp.float32, 0.5, 1.5)
    be2 = jax.random.uniform(kbe2, (C,), jnp.float32, -0.5, 0.5)
    params = (w1, b1, g1, be1, w2, b2, g2, be2)
    packed = pack_params(*params)

    # --- single module-shaped input (N, C, H, W), grid of 1 slab ---
    x = jax.random.normal(kx, (N, C, H, W), jnp.float32)
    out = jax.block_until_ready(resblock2d(x, packed))
    assert out.shape == (N, C, H, W), out.shape

    ref_match = _reference(x, params, bf16_operands=True)   # kernel's mixed precision
    ref_exact = _reference(x, params, bf16_operands=False)  # exact f32 module semantics
    err_match = float(jnp.max(jnp.abs(out - ref_match)))
    err_exact = float(jnp.max(jnp.abs(out - ref_exact)))
    # tight vs the precision-matched reference (validates kernel logic), loose vs the
    # f32 module (quantifies the bf16-operand rounding authorized by the perf review).
    assert err_match < 2e-2, f"mismatch vs bf16-operand reference: {err_match}"
    assert err_exact < 8e-2, f"mismatch vs f32 module reference: {err_exact}"

    # --- gridded path: several independent slabs in ONE pallas_call (parallel axis) ---
    xs = jax.random.normal(kxg, (3, N, C, H, W), jnp.float32)
    outs = jax.block_until_ready(resblock2d(xs, packed))
    refs = jax.vmap(lambda v: _reference(v, params, bf16_operands=True))(xs)
    err_grid = float(jnp.max(jnp.abs(outs - refs)))
    assert outs.shape == xs.shape, outs.shape
    assert err_grid < 2e-2, f"gridded mismatch vs bf16-operand reference: {err_grid}"

    print("KERNEL_OK")
</pallas_src>

<mosaic_0001>
module attributes {stable_mosaic.version = 11 : i64} {
  func.func @_resblock_kernel(%arg0: i32, %arg1: memref<1x8x256xf32, #tpu.memory_space<vmem>>, %arg2: memref<224x256xf32, #tpu.memory_space<vmem>>, %arg3: memref<1x8x256xf32, #tpu.memory_space<vmem>>, %arg4: memref<256x256xbf16, #tpu.memory_space<vmem>>) attributes {dimension_semantics = [#tpu.dimension_semantics<parallel>], iteration_bounds = array<i64: 1>, scalar_prefetch = 0 : i64, scratch_operands = 1 : i64, tpu.core_type = #tpu.core_type<tc>, window_params = [{transform_indices = @transform_0, window_bounds = array<i64: 1, 8, 256>}, {pipeline_mode = #tpu.pipeline_mode<synchronous>, transform_indices = @transform_1, window_bounds = array<i64: 224, 256>}, {transform_indices = @transform_2, window_bounds = array<i64: 1, 8, 256>}]} {
    %c0 = arith.constant 0 : index
    %c0_0 = arith.constant 0 : index
    %c0_1 = arith.constant 0 : index
    %0 = vector.load %arg1[%c0, %c0_0, %c0_1] : memref<1x8x256xf32, #tpu.memory_space<vmem>>, vector<1x8x256xf32>
    %1 = vector.shape_cast %0 : vector<1x8x256xf32> to vector<8x256xf32>
    %cst = arith.constant 0.000000e+00 : bf16
    %2 = vector.broadcast %cst : bf16 to vector<48x256xbf16>
    %c208 = arith.constant 208 : index
    %c0_2 = arith.constant 0 : index
    %3 = vector.load %arg4[%c208, %c0_2] : memref<256x256xbf16, #tpu.memory_space<vmem>>, vector<48x256xbf16>
    tpu.vector_store %arg4[%c208, %c0_2], %2 {strides = array<i32>} : memref<256x256xbf16, #tpu.memory_space<vmem>>, vector<48x256xbf16>,
    %c0_3 = arith.constant 0 : index
    %c0_4 = arith.constant 0 : index
    %4 = vector.load %arg2[%c0_3, %c0_4] : memref<224x256xf32, #tpu.memory_space<vmem>>, vector<8x256xf32>
    %5 = arith.truncf %4 : vector<8x256xf32> to vector<8x256xbf16>
    %c8 = arith.constant 8 : index
    %c0_5 = arith.constant 0 : index
    %6 = vector.load %arg2[%c8, %c0_5] : memref<224x256xf32, #tpu.memory_space<vmem>>, vector<8x256xf32>
    %7 = arith.truncf %6 : vector<8x256xf32> to vector<8x256xbf16>
    %c216 = arith.constant 216 : index
    %c0_6 = arith.constant 0 : index
    %8 = vector.load %arg2[%c216, %c0_6] : memref<224x256xf32, #tpu.memory_space<vmem>>, vector<8x1xf32>
    %c216_7 = arith.constant 216 : index
    %c1 = arith.constant 1 : index
    %9 = vector.load %arg2[%c216_7, %c1] : memref<224x256xf32, #tpu.memory_space<vmem>>, vector<8x1xf32>
    %c216_8 = arith.constant 216 : index
    %c2 = arith.constant 2 : index
    %10 = vector.load %arg2[%c216_8, %c2] : memref<224x256xf32, #tpu.memory_space<vmem>>, vector<8x1xf32>
    %c216_9 = arith.constant 216 : index
    %c3 = arith.constant 3 : index
    %11 = vector.load %arg2[%c216_9, %c3] : memref<224x256xf32, #tpu.memory_space<vmem>>, vector<8x1xf32>
    %c34_i32 = arith.constant 34 : i32
    %12 = tpu.dynamic_rotate %1 by %c34_i32 dim 1 : vector<8x256xf32>, i32 -> vector<8x256xf32>
    %c16 = arith.constant 16 : index
    %c0_10 = arith.constant 0 : index
    %13 = vector.load %arg2[%c16, %c0_10] : memref<224x256xf32, #tpu.memory_space<vmem>>, vector<8x256xf32>
    %14 = arith.mulf %12, %13 : vector<8x256xf32>
    %c33_i32 = arith.constant 33 : i32
    %15 = tpu.dynamic_rotate %1 by %c33_i32 dim 1 : vector<8x256xf32>, i32 -> vector<8x256xf32>
    %c24 = arith.constant 24 : index
    %c0_11 = arith.constant 0 : index
    %16 = vector.load %arg2[%c24, %c0_11] : memref<224x256xf32, #tpu.memory_space<vmem>>, vector<8x256xf32>
    %17 = arith.mulf %15, %16 : vector<8x256xf32>
    %18 = tpu.concatenate %14, %17 in 0 : vector<8x256xf32>, vector<8x256xf32> -> vector<16x256xf32>
    %19 = arith.truncf %18 : vector<16x256xf32> to vector<16x256xbf16>
    %c0_12 = arith.constant 0 : index
    %c0_13 = arith.constant 0 : index
    %20 = vector.load %arg4[%c0_12, %c0_13] : memref<256x256xbf16, #tpu.memory_space<vmem>>, vector<16x256xbf16>
    tpu.vector_store %arg4[%c0_12, %c0_13], %19 {strides = array<i32>} : memref<256x256xbf16, #tpu.memory_space<vmem>>, vector<16x256xbf16>,
    %c32_i32 = arith.constant 32 : i32
    %21 = tpu.dynamic_rotate %1 by %c32_i32 dim 1 : vector<8x256xf32>, i32 -> vector<8x256xf32>
    %c32 = arith.constant 32 : index
    %c0_14 = arith.constant 0 : index
    %22 = vector.load %arg2[%c32, %c0_14] : memref<224x256xf32, #tpu.memory_space<vmem>>, vector<8x256xf32>
    %23 = arith.mulf %21, %22 : vector<8x256xf32>
    %c31_i32 = arith.constant 31 : i32
    %24 = tpu.dynamic_rotate %1 by %c31_i32 dim 1 : vector<8x256xf32>, i32 -> vector<8x256xf32>
    %c40 = arith.constant 40 : index
    %c0_15 = arith.constant 0 : index
    %25 = vector.load %arg2[%c40, %c0_15] : memref<224x256xf32, #tpu.memory_space<vmem>>, vector<8x256xf32>
    %26 = arith.mulf %24, %25 : vector<8x256xf32>
    %27 = tpu.concatenate %23, %26 in 0 : vector<8x256xf32>, vector<8x256xf32> -> vector<16x256xf32>
    %28 = arith.truncf %27 : vector<16x256xf32> to vector<16x256xbf16>
    %c16_16 = arith.constant 16 : index
    %c0_17 = arith.constant 0 : index
    %29 = vector.load %arg4[%c16_16, %c0_17] : memref<256x256xbf16, #tpu.memory_space<vmem>>, vector<16x256xbf16>
    tpu.vector_store %arg4[%c16_16, %c0_17], %28 {strides = array<i32>} : memref<256x256xbf16, #tpu.memory_space<vmem>>, vector<16x256xbf16>,
    %c30_i32 = arith.constant 30 : i32
    %30 = tpu.dynamic_rotate %1 by %c30_i32 dim 1 : vector<8x256xf32>, i32 -> vector<8x256xf32>
    %c48 = arith.constant 48 : index
    %c0_18 = arith.constant 0 : index
    %31 = vector.load %arg2[%c48, %c0_18] : memref<224x256xf32, #tpu.memory_space<vmem>>, vector<8x256xf32>
    %32 = arith.mulf %30, %31 : vector<8x256xf32>
    %c18_i32 = arith.constant 18 : i32
    %33 = tpu.dynamic_rotate %1 by %c18_i32 dim 1 : vector<8x256xf32>, i32 -> vector<8x256xf32>
    %c56 = arith.constant 56 : index
    %c0_19 = arith.constant 0 : index
    %34 = vector.load %arg2[%c56, %c0_19] : memref<224x256xf32, #tpu.memory_space<vmem>>, vector<8x256xf32>
    %35 = arith.mulf %33, %34 : vector<8x256xf32>
    %36 = tpu.concatenate %32, %35 in 0 : vector<8x256xf32>, vector<8x256xf32> -> vector<16x256xf32>
    %37 = arith.truncf %36 : vector<16x256xf32> to vector<16x256xbf16>
    %c32_20 = arith.constant 32 : index
    %c0_21 = arith.constant 0 : index
    %38 = vector.load %arg4[%c32_20, %c0_21] : memref<256x256xbf16, #tpu.memory_space<vmem>>, vector<16x256xbf16>
    tpu.vector_store %arg4[%c32_20, %c0_21], %37 {strides = array<i32>} : memref<256x256xbf16, #tpu.memory_space<vmem>>, vector<16x256xbf16>,
    %c17_i32 = arith.constant 17 : i32
    %39 = tpu.dynamic_rotate %1 by %c17_i32 dim 1 : vector<8x256xf32>, i32 -> vector<8x256xf32>
    %c64 = arith.constant 64 : index
    %c0_22 = arith.constant 0 : index
    %40 = vector.load %arg2[%c64, %c0_22] : memref<224x256xf32, #tpu.memory_space<vmem>>, vector<8x256xf32>
    %41 = arith.mulf %39, %40 : vector<8x256xf32>
    %c16_i32 = arith.constant 16 : i32
    %42 = tpu.dynamic_rotate %1 by %c16_i32 dim 1 : vector<8x256xf32>, i32 -> vector<8x256xf32>
    %c72 = arith.constant 72 : index
    %c0_23 = arith.constant 0 : index
    %43 = vector.load %arg2[%c72, %c0_23] : memref<224x256xf32, #tpu.memory_space<vmem>>, vector<8x256xf32>
    %44 = arith.mulf %42, %43 : vector<8x256xf32>
    %45 = tpu.concatenate %41, %44 in 0 : vector<8x256xf32>, vector<8x256xf32> -> vector<16x256xf32>
    %46 = arith.truncf %45 : vector<16x256xf32> to vector<16x256xbf16>
    %c48_24 = arith.constant 48 : index
    %c0_25 = arith.constant 0 : index
    %47 = vector.load %arg4[%c48_24, %c0_25] : memref<256x256xbf16, #tpu.memory_space<vmem>>, vector<16x256xbf16>
    tpu.vector_store %arg4[%c48_24, %c0_25], %46 {strides = array<i32>} : memref<256x256xbf16, #tpu.memory_space<vmem>>, vector<16x256xbf16>,
    %c15_i32 = arith.constant 15 : i32
    %48 = tpu.dynamic_rotate %1 by %c15_i32 dim 1 : vector<8x256xf32>, i32 -> vector<8x256xf32>
    %c80 = arith.constant 80 : index
    %c0_26 = arith.constant 0 : index
    %49 = vector.load %arg2[%c80, %c0_26] : memref<224x256xf32, #tpu.memory_space<vmem>>, vector<8x256xf32>
    %50 = arith.mulf %48, %49 : vector<8x256xf32>
    %c14_i32 = arith.constant 14 : i32
    %51 = tpu.dynamic_rotate %1 by %c14_i32 dim 1 : vector<8x256xf32>, i32 -> vector<8x256xf32>
    %c88 = arith.constant 88 : index
    %c0_27 = arith.constant 0 : index
    %52 = vector.load %arg2[%c88, %c0_27] : memref<224x256xf32, #tpu.memory_space<vmem>>, vector<8x256xf32>
    %53 = arith.mulf %51, %52 : vector<8x256xf32>
    %54 = tpu.concatenate %50, %53 in 0 : vector<8x256xf32>, vector<8x256xf32> -> vector<16x256xf32>
    %55 = arith.truncf %54 : vector<16x256xf32> to vector<16x256xbf16>
    %c64_28 = arith.constant 64 : index
    %c0_29 = arith.constant 0 : index
    %56 = vector.load %arg4[%c64_28, %c0_29] : memref<256x256xbf16, #tpu.memory_space<vmem>>, vector<16x256xbf16>
    tpu.vector_store %arg4[%c64_28, %c0_29], %55 {strides = array<i32>} : memref<256x256xbf16, #tpu.memory_space<vmem>>, vector<16x256xbf16>,
    %c2_i32 = arith.constant 2 : i32
    %57 = tpu.dynamic_rotate %1 by %c2_i32 dim 1 : vector<8x256xf32>, i32 -> vector<8x256xf32>
    %c96 = arith.constant 96 : index
    %c0_30 = arith.constant 0 : index
    %58 = vector.load %arg2[%c96, %c0_30] : memref<224x256xf32, #tpu.memory_space<vmem>>, vector<8x256xf32>
    %59 = arith.mulf %57, %58 : vector<8x256xf32>
    %c1_i32 = arith.constant 1 : i32
    %60 = tpu.dynamic_rotate %1 by %c1_i32 dim 1 : vector<8x256xf32>, i32 -> vector<8x256xf32>
    %c104 = arith.constant 104 : index
    %c0_31 = arith.constant 0 : index
    %61 = vector.load %arg2[%c104, %c0_31] : memref<224x256xf32, #tpu.memory_space<vmem>>, vector<8x256xf32>
    %62 = arith.mulf %60, %61 : vector<8x256xf32>
    %63 = tpu.concatenate %59, %62 in 0 : vector<8x256xf32>, vector<8x256xf32> -> vector<16x256xf32>
    %64 = arith.truncf %63 : vector<16x256xf32> to vector<16x256xbf16>
    %c80_32 = arith.constant 80 : index
    %c0_33 = arith.constant 0 : index
    %65 = vector.load %arg4[%c80_32, %c0_33] : memref<256x256xbf16, #tpu.memory_space<vmem>>, vector<16x256xbf16>
    tpu.vector_store %arg4[%c80_32, %c0_33], %64 {strides = array<i32>} : memref<256x256xbf16, #tpu.memory_space<vmem>>, vector<16x256xbf16>,
    %c255_i32 = arith.constant 255 : i32
    %66 = tpu.dynamic_rotate %1 by %c255_i32 dim 1 : vector<8x256xf32>, i32 -> vector<8x256xf32>
    %c120 = arith.constant 120 : index
    %c0_34 = arith.constant 0 : index
    %67 = vector.load %arg2[%c120, %c0_34] : memref<224x256xf32, #tpu.memory_space<vmem>>, vector<8x256xf32>
    %68 = arith.mulf %66, %67 : vector<8x256xf32>
    %69 = tpu.concatenate %1, %68 in 0 : vector<8x256xf32>, vector<8x256xf32> -> vector<16x256xf32>
    %70 = arith.truncf %69 : vector<16x256xf32> to vector<16x256xbf16>
    %c96_35 = arith.constant 96 : index
    %c0_36 = arith.constant 0 : index
    %71 = vector.load %arg4[%c96_35, %c0_36] : memref<256x256xbf16, #tpu.memory_space<vmem>>, vector<16x256xbf16>
    tpu.vector_store %arg4[%c96_35, %c0_36], %70 {strides = array<i32>} : memref<256x256xbf16, #tpu.memory_space<vmem>>, vector<16x256xbf16>,
    %c254_i32 = arith.constant 254 : i32
    %72 = tpu.dynamic_rotate %1 by %c254_i32 dim 1 : vector<8x256xf32>, i32 -> vector<8x256xf32>
    %c128 = arith.constant 128 : index
    %c0_37 = arith.constant 0 : index
    %73 = vector.load %arg2[%c128, %c0_37] : memref<224x256xf32, #tpu.memory_space<vmem>>, vector<8x256xf32>
    %74 = arith.mulf %72, %73 : vector<8x256xf32>
    %c242_i32 = arith.constant 242 : i32
    %75 = tpu.dynamic_rotate %1 by %c242_i32 dim 1 : vector<8x256xf32>, i32 -> vector<8x256xf32>
    %c136 = arith.constant 136 : index
    %c0_38 = arith.constant 0 : index
    %76 = vector.load %arg2[%c136, %c0_38] : memref<224x256xf32, #tpu.memory_space<vmem>>, vector<8x256xf32>
    %77 = arith.mulf %75, %76 : vector<8x256xf32>
    %78 = tpu.concatenate %74, %77 in 0 : vector<8x256xf32>, vector<8x256xf32> -> vector<16x256xf32>
    %79 = arith.truncf %78 : vector<16x256xf32> to vector<16x256xbf16>
    %c112 = arith.constant 112 : index
    %c0_39 = arith.constant 0 : index
    %80 = vector.load %arg4[%c112, %c0_39] : memref<256x256xbf16, #tpu.memory_space<vmem>>, vector<16x256xbf16>
    tpu.vector_store %arg4[%c112, %c0_39], %79 {strides = array<i32>} : memref<256x256xbf16, #tpu.memory_space<vmem>>, vector<16x256xbf16>,
    %c241_i32 = arith.constant 241 : i32
    %81 = tpu.dynamic_rotate %1 by %c241_i32 dim 1 : vector<8x256xf32>, i32 -> vector<8x256xf32>
    %c144 = arith.constant 144 : index
    %c0_40 = arith.constant 0 : index
    %82 = vector.load %arg2[%c144, %c0_40] : memref<224x256xf32, #tpu.memory_space<vmem>>, vector<8x256xf32>
    %83 = arith.mulf %81, %82 : vector<8x256xf32>
    %c240_i32 = arith.constant 240 : i32
    %84 = tpu.dynamic_rotate %1 by %c240_i32 dim 1 : vector<8x256xf32>, i32 -> vector<8x256xf32>
    %c152 = arith.constant 152 : index
    %c0_41 = arith.constant 0 : index
    %85 = vector.load %arg2[%c152, %c0_41] : memref<224x256xf32, #tpu.memory_space<vmem>>, vector<8x256xf32>
    %86 = arith.mulf %84, %85 : vector<8x256xf32>
    %87 = tpu.concatenate %83, %86 in 0 : vector<8x256xf32>, vector<8x256xf32> -> vector<16x256xf32>
    %88 = arith.truncf %87 : vector<16x256xf32> to vector<16x256xbf16>
    %c128_42 = arith.constant 128 : index
    %c0_43 = arith.constant 0 : index
    %89 = vector.load %arg4[%c128_42, %c0_43] : memref<256x256xbf16, #tpu.memory_space<vmem>>, vector<16x256xbf16>
    tpu.vector_store %arg4[%c128_42, %c0_43], %88 {strides = array<i32>} : memref<256x256xbf16, #tpu.memory_space<vmem>>, vector<16x256xbf16>,
    %c239_i32 = arith.constant 239 : i32
    %90 = tpu.dynamic_rotate %1 by %c239_i32 dim 1 : vector<8x256xf32>, i32 -> vector<8x256xf32>
    %c160 = arith.constant 160 : index
    %c0_44 = arith.constant 0 : index
    %91 = vector.load %arg2[%c160, %c0_44] : memref<224x256xf32, #tpu.memory_space<vmem>>, vector<8x256xf32>
    %92 = arith.mulf %90, %91 : vector<8x256xf32>
    %c238_i32 = arith.constant 238 : i32
    %93 = tpu.dynamic_rotate %1 by %c238_i32 dim 1 : vector<8x256xf32>, i32 -> vector<8x256xf32>
    %c168 = arith.constant 168 : index
    %c0_45 = arith.constant 0 : index
    %94 = vector.load %arg2[%c168, %c0_45] : memref<224x256xf32, #tpu.memory_space<vmem>>, vector<8x256xf32>
    %95 = arith.mulf %93, %94 : vector<8x256xf32>
    %96 = tpu.concatenate %92, %95 in 0 : vector<8x256xf32>, vector<8x256xf32> -> vector<16x256xf32>
    %97 = arith.truncf %96 : vector<16x256xf32> to vector<16x256xbf16>
    %c144_46 = arith.constant 144 : index
    %c0_47 = arith.constant 0 : index
    %98 = vector.load %arg4[%c144_46, %c0_47] : memref<256x256xbf16, #tpu.memory_space<vmem>>, vector<16x256xbf16>
    tpu.vector_store %arg4[%c144_46, %c0_47], %97 {strides = array<i32>} : memref<256x256xbf16, #tpu.memory_space<vmem>>, vector<16x256xbf16>,
    %c226_i32 = arith.constant 226 : i32
    %99 = tpu.dynamic_rotate %1 by %c226_i32 dim 1 : vector<8x256xf32>, i32 -> vector<8x256xf32>
    %c176 = arith.constant 176 : index
    %c0_48 = arith.constant 0 : index
    %100 = vector.load %arg2[%c176, %c0_48] : memref<224x256xf32, #tpu.memory_space<vmem>>, vector<8x256xf32>
    %101 = arith.mulf %99, %100 : vector<8x256xf32>
    %c225_i32 = arith.constant 225 : i32
    %102 = tpu.dynamic_rotate %1 by %c225_i32 dim 1 : vector<8x256xf32>, i32 -> vector<8x256xf32>
    %c184 = arith.constant 184 : index
    %c0_49 = arith.constant 0 : index
    %103 = vector.load %arg2[%c184, %c0_49] : memref<224x256xf32, #tpu.memory_space<vmem>>, vector<8x256xf32>
    %104 = arith.mulf %102, %103 : vector<8x256xf32>
    %105 = tpu.concatenate %101, %104 in 0 : vector<8x256xf32>, vector<8x256xf32> -> vector<16x256xf32>
    %106 = arith.truncf %105 : vector<16x256xf32> to vector<16x256xbf16>
    %c160_50 = arith.constant 160 : index
    %c0_51 = arith.constant 0 : index
    %107 = vector.load %arg4[%c160_50, %c0_51] : memref<256x256xbf16, #tpu.memory_space<vmem>>, vector<16x256xbf16>
    tpu.vector_store %arg4[%c160_50, %c0_51], %106 {strides = array<i32>} : memref<256x256xbf16, #tpu.memory_space<vmem>>, vector<16x256xbf16>,
    %c224_i32 = arith.constant 224 : i32
    %108 = tpu.dynamic_rotate %1 by %c224_i32 dim 1 : vector<8x256xf32>, i32 -> vector<8x256xf32>
    %c192 = arith.constant 192 : index
    %c0_52 = arith.constant 0 : index
    %109 = vector.load %arg2[%c192, %c0_52] : memref<224x256xf32, #tpu.memory_space<vmem>>, vector<8x256xf32>
    %110 = arith.mulf %108, %109 : vector<8x256xf32>
    %c223_i32 = arith.constant 223 : i32
    %111 = tpu.dynamic_rotate %1 by %c223_i32 dim 1 : vector<8x256xf32>, i32 -> vector<8x256xf32>
    %c200 = arith.constant 200 : index
    %c0_53 = arith.constant 0 : index
    %112 = vector.load %arg2[%c200, %c0_53] : memref<224x256xf32, #tpu.memory_space<vmem>>, vector<8x256xf32>
    %113 = arith.mulf %111, %112 : vector<8x256xf32>
    %114 = tpu.concatenate %110, %113 in 0 : vector<8x256xf32>, vector<8x256xf32> -> vector<16x256xf32>
    %115 = arith.truncf %114 : vector<16x256xf32> to vector<16x256xbf16>
    %c176_54 = arith.constant 176 : index
    %c0_55 = arith.constant 0 : index
    %116 = vector.load %arg4[%c176_54, %c0_55] : memref<256x256xbf16, #tpu.memory_space<vmem>>, vector<16x256xbf16>
    tpu.vector_store %arg4[%c176_54, %c0_55], %115 {strides = array<i32>} : memref<256x256xbf16, #tpu.memory_space<vmem>>, vector<16x256xbf16>,
    %c222_i32 = arith.constant 222 : i32
    %117 = tpu.dynamic_rotate %1 by %c222_i32 dim 1 : vector<8x256xf32>, i32 -> vector<8x256xf32>
    %c208_56 = arith.constant 208 : index
    %c0_57 = arith.constant 0 : index
    %118 = vector.load %arg2[%c208_56, %c0_57] : memref<224x256xf32, #tpu.memory_space<vmem>>, vector<8x256xf32>
    %119 = arith.mulf %117, %118 : vector<8x256xf32>
    %cst_58 = arith.constant 0.000000e+00 : f32
    %120 = vector.broadcast %cst_58 : f32 to vector<8x256xf32>
    %121 = tpu.concatenate %119, %120 in 0 : vector<8x256xf32>, vector<8x256xf32> -> vector<16x256xf32>
    %122 = arith.truncf %121 : vector<16x256xf32> to vector<16x256xbf16>
    %c192_59 = arith.constant 192 : index
    %c0_60 = arith.constant 0 : index
    %123 = vector.load %arg4[%c192_59, %c0_60] : memref<256x256xbf16, #tpu.memory_space<vmem>>, vector<16x256xbf16>
    tpu.vector_store %arg4[%c192_59, %c0_60], %122 {strides = array<i32>} : memref<256x256xbf16, #tpu.memory_space<vmem>>, vector<16x256xbf16>,
    %c0_61 = arith.constant 0 : index
    %c0_62 = arith.constant 0 : index
    %124 = vector.load %arg4[%c0_61, %c0_62] : memref<256x256xbf16, #tpu.memory_space<vmem>>, vector<256x256xbf16>
    %cst_63 = arith.constant dense<0.000000e+00> : vector<8x256xf32>
    %125 = tpu.matmul %5, %124, %cst_63 {dimension_numbers = #tpu.dot_dimension_numbers<[1], [0], [0], [1], [0, 0, 1, 1], [], []>} : vector<8x256xbf16>, vector<256x256xbf16>, vector<8x256xf32> -> vector<8x256xf32>
    %c4_i32 = arith.constant 4 : i32
    %126 = tpu.dynamic_rotate %125 by %c4_i32 dim 0 : vector<8x256xf32>, i32 -> vector<8x256xf32>
    %127 = arith.addf %125, %126 : vector<8x256xf32>
    %cst_64 = arith.constant dense<0.000000e+00> : vector<8xf32>
    %128 = vector.multi_reduction <add>, %127, %cst_64 [1] : vector<8x256xf32> to vector<8xf32>
    %129 = vector.shape_cast %128 : vector<8xf32> to vector<8x1xf32>
    %cst_65 = arith.constant 5.120000e+02 : f32
    %130 = vector.broadcast %cst_65 : f32 to vector<8x1xf32>
    %131 = arith.divf %129, %130 : vector<8x1xf32>
    %132 = vector.broadcast %131 : vector<8x1xf32> to vector<8x256xf32>
    %133 = arith.subf %125, %132 : vector<8x256xf32>
    %134 = arith.mulf %133, %133 : vector<8x256xf32>
    %c4_i32_66 = arith.constant 4 : i32
    %135 = tpu.dynamic_rotate %134 by %c4_i32_66 dim 0 : vector<8x256xf32>, i32 -> vector<8x256xf32>
    %136 = arith.addf %134, %135 : vector<8x256xf32>
    %cst_67 = arith.constant dense<0.000000e+00> : vector<8xf32>
    %137 = vector.multi_reduction <add>, %136, %cst_67 [1] : vector<8x256xf32> to vector<8xf32>
    %138 = vector.shape_cast %137 : vector<8xf32> to vector<8x1xf32>
    %cst_68 = arith.constant 5.120000e+02 : f32
    %139 = vector.broadcast %cst_68 : f32 to vector<8x1xf32>
    %140 = arith.divf %138, %139 : vector<8x1xf32>
    %cst_69 = arith.constant 9.99999974E-6 : f32
    %141 = vector.broadcast %cst_69 : f32 to vector<8x1xf32>
    %142 = arith.addf %140, %141 : vector<8x1xf32>
    %143 = math.rsqrt %142 : vector<8x1xf32>
    %144 = arith.mulf %8, %143 : vector<8x1xf32>
    %145 = vector.broadcast %144 : vector<8x1xf32> to vector<8x256xf32>
    %146 = arith.mulf %133, %145 : vector<8x256xf32>
    %147 = vector.broadcast %9 : vector<8x1xf32> to vector<8x256xf32>
    %148 = arith.addf %146, %147 : vector<8x256xf32>
    %cst_70 = arith.constant 0.000000e+00 : f32
    %149 = vector.broadcast %cst_70 : f32 to vector<8x256xf32>
    %150 = arith.maximumf %148, %149 : vector<8x256xf32>
    %c34_i32_71 = arith.constant 34 : i32
    %151 = tpu.dynamic_rotate %150 by %c34_i32_71 dim 1 : vector<8x256xf32>, i32 -> vector<8x256xf32>
    %c16_72 = arith.constant 16 : index
    %c0_73 = arith.constant 0 : index
    %152 = vector.load %arg2[%c16_72, %c0_73] : memref<224x256xf32, #tpu.memory_space<vmem>>, vector<8x256xf32>
    %153 = arith.mulf %151, %152 : vector<8x256xf32>
    %c33_i32_74 = arith.constant 33 : i32
    %154 = tpu.dynamic_rotate %150 by %c33_i32_74 dim 1 : vector<8x256xf32>, i32 -> vector<8x256xf32>
    %c24_75 = arith.constant 24 : index
    %c0_76 = arith.constant 0 : index
    %155 = vector.load %arg2[%c24_75, %c0_76] : memref<224x256xf32, #tpu.memory_space<vmem>>, vector<8x256xf32>
    %156 = arith.mulf %154, %155 : vector<8x256xf32>
    %157 = tpu.concatenate %153, %156 in 0 : vector<8x256xf32>, vector<8x256xf32> -> vector<16x256xf32>
    %158 = arith.truncf %157 : vector<16x256xf32> to vector<16x256xbf16>
    %c0_77 = arith.constant 0 : index
    %c0_78 = arith.constant 0 : index
    %159 = vector.load %arg4[%c0_77, %c0_78] : memref<256x256xbf16, #tpu.memory_space<vmem>>, vector<16x256xbf16>
    tpu.vector_store %arg4[%c0_77, %c0_78], %158 {strides = array<i32>} : memref<256x256xbf16, #tpu.memory_space<vmem>>, vector<16x256xbf16>,
    %c32_i32_79 = arith.constant 32 : i32
    %160 = tpu.dynamic_rotate %150 by %c32_i32_79 dim 1 : vector<8x256xf32>, i32 -> vector<8x256xf32>
    %c32_80 = arith.constant 32 : index
    %c0_81 = arith.constant 0 : index
    %161 = vector.load %arg2[%c32_80, %c0_81] : memref<224x256xf32, #tpu.memory_space<vmem>>, vector<8x256xf32>
    %162 = arith.mulf %160, %161 : vector<8x256xf32>
    %c31_i32_82 = arith.constant 31 : i32
    %163 = tpu.dynamic_rotate %150 by %c31_i32_82 dim 1 : vector<8x256xf32>, i32 -> vector<8x256xf32>
    %c40_83 = arith.constant 40 : index
    %c0_84 = arith.constant 0 : index
    %164 = vector.load %arg2[%c40_83, %c0_84] : memref<224x256xf32, #tpu.memory_space<vmem>>, vector<8x256xf32>
    %165 = arith.mulf %163, %164 : vector<8x256xf32>
    %166 = tpu.concatenate %162, %165 in 0 : vector<8x256xf32>, vector<8x256xf32> -> vector<16x256xf32>
    %167 = arith.truncf %166 : vector<16x256xf32> to vector<16x256xbf16>
    %c16_85 = arith.constant 16 : index
    %c0_86 = arith.constant 0 : index
    %168 = vector.load %arg4[%c16_85, %c0_86] : memref<256x256xbf16, #tpu.memory_space<vmem>>, vector<16x256xbf16>
    tpu.vector_store %arg4[%c16_85, %c0_86], %167 {strides = array<i32>} : memref<256x256xbf16, #tpu.memory_space<vmem>>, vector<16x256xbf16>,
    %c30_i32_87 = arith.constant 30 : i32
    %169 = tpu.dynamic_rotate %150 by %c30_i32_87 dim 1 : vector<8x256xf32>, i32 -> vector<8x256xf32>
    %c48_88 = arith.constant 48 : index
    %c0_89 = arith.constant 0 : index
    %170 = vector.load %arg2[%c48_88, %c0_89] : memref<224x256xf32, #tpu.memory_space<vmem>>, vector<8x256xf32>
    %171 = arith.mulf %169, %170 : vector<8x256xf32>
    %c18_i32_90 = arith.constant 18 : i32
    %172 = tpu.dynamic_rotate %150 by %c18_i32_90 dim 1 : vector<8x256xf32>, i32 -> vector<8x256xf32>
    %c56_91 = arith.constant 56 : index
    %c0_92 = arith.constant 0 : index
    %173 = vector.load %arg2[%c56_91, %c0_92] : memref<224x256xf32, #tpu.memory_space<vmem>>, vector<8x256xf32>
    %174 = arith.mulf %172, %173 : vector<8x256xf32>
    %175 = tpu.concatenate %171, %174 in 0 : vector<8x256xf32>, vector<8x256xf32> -> vector<16x256xf32>
    %176 = arith.truncf %175 : vector<16x256xf32> to vector<16x256xbf16>
    %c32_93 = arith.constant 32 : index
    %c0_94 = arith.constant 0 : index
    %177 = vector.load %arg4[%c32_93, %c0_94] : memref<256x256xbf16, #tpu.memory_space<vmem>>, vector<16x256xbf16>
    tpu.vector_store %arg4[%c32_93, %c0_94], %176 {strides = array<i32>} : memref<256x256xbf16, #tpu.memory_space<vmem>>, vector<16x256xbf16>,
    %c17_i32_95 = arith.constant 17 : i32
    %178 = tpu.dynamic_rotate %150 by %c17_i32_95 dim 1 : vector<8x256xf32>, i32 -> vector<8x256xf32>
    %c64_96 = arith.constant 64 : index
    %c0_97 = arith.constant 0 : index
    %179 = vector.load %arg2[%c64_96, %c0_97] : memref<224x256xf32, #tpu.memory_space<vmem>>, vector<8x256xf32>
    %180 = arith.mulf %178, %179 : vector<8x256xf32>
    %c16_i32_98 = arith.constant 16 : i32
    %181 = tpu.dynamic_rotate %150 by %c16_i32_98 dim 1 : vector<8x256xf32>, i32 -> vector<8x256xf32>
    %c72_99 = arith.constant 72 : index
    %c0_100 = arith.constant 0 : index
    %182 = vector.load %arg2[%c72_99, %c0_100] : memref<224x256xf32, #tpu.memory_space<vmem>>, vector<8x256xf32>
    %183 = arith.mulf %181, %182 : vector<8x256xf32>
    %184 = tpu.concatenate %180, %183 in 0 : vector<8x256xf32>, vector<8x256xf32> -> vector<16x256xf32>
    %185 = arith.truncf %184 : vector<16x256xf32> to vector<16x256xbf16>
    %c48_101 = arith.constant 48 : index
    %c0_102 = arith.constant 0 : index
    %186 = vector.load %arg4[%c48_101, %c0_102] : memref<256x256xbf16, #tpu.memory_space<vmem>>, vector<16x256xbf16>
    tpu.vector_store %arg4[%c48_101, %c0_102], %185 {strides = array<i32>} : memref<256x256xbf16, #tpu.memory_space<vmem>>, vector<16x256xbf16>,
    %c15_i32_103 = arith.constant 15 : i32
    %187 = tpu.dynamic_rotate %150 by %c15_i32_103 dim 1 : vector<8x256xf32>, i32 -> vector<8x256xf32>
    %c80_104 = arith.constant 80 : index
    %c0_105 = arith.constant 0 : index
    %188 = vector.load %arg2[%c80_104, %c0_105] : memref<224x256xf32, #tpu.memory_space<vmem>>, vector<8x256xf32>
    %189 = arith.mulf %187, %188 : vector<8x256xf32>
    %c14_i32_106 = arith.constant 14 : i32
    %190 = tpu.dynamic_rotate %150 by %c14_i32_106 dim 1 : vector<8x256xf32>, i32 -> vector<8x256xf32>
    %c88_107 = arith.constant 88 : index
    %c0_108 = arith.constant 0 : index
    %191 = vector.load %arg2[%c88_107, %c0_108] : memref<224x256xf32, #tpu.memory_space<vmem>>, vector<8x256xf32>
    %192 = arith.mulf %190, %191 : vector<8x256xf32>
    %193 = tpu.concatenate %189, %192 in 0 : vector<8x256xf32>, vector<8x256xf32> -> vector<16x256xf32>
    %194 = arith.truncf %193 : vector<16x256xf32> to vector<16x256xbf16>
    %c64_109 = arith.constant 64 : index
    %c0_110 = arith.constant 0 : index
    %195 = vector.load %arg4[%c64_109, %c0_110] : memref<256x256xbf16, #tpu.memory_space<vmem>>, vector<16x256xbf16>
    tpu.vector_store %arg4[%c64_109, %c0_110], %194 {strides = array<i32>} : memref<256x256xbf16, #tpu.memory_space<vmem>>, vector<16x256xbf16>,
    %c2_i32_111 = arith.constant 2 : i32
    %196 = tpu.dynamic_rotate %150 by %c2_i32_111 dim 1 : vector<8x256xf32>, i32 -> vector<8x256xf32>
    %c96_112 = arith.constant 96 : index
    %c0_113 = arith.constant 0 : index
    %197 = vector.load %arg2[%c96_112, %c0_113] : memref<224x256xf32, #tpu.memory_space<vmem>>, vector<8x256xf32>
    %198 = arith.mulf %196, %197 : vector<8x256xf32>
    %c1_i32_114 = arith.constant 1 : i32
    %199 = tpu.dynamic_rotate %150 by %c1_i32_114 dim 1 : vector<8x256xf32>, i32 -> vector<8x256xf32>
    %c104_115 = arith.constant 104 : index
    %c0_116 = arith.constant 0 : index
    %200 = vector.load %arg2[%c104_115, %c0_116] : memref<224x256xf32, #tpu.memory_space<vmem>>, vector<8x256xf32>
    %201 = arith.mulf %199, %200 : vector<8x256xf32>
    %202 = tpu.concatenate %198, %201 in 0 : vector<8x256xf32>, vector<8x256xf32> -> vector<16x256xf32>
    %203 = arith.truncf %202 : vector<16x256xf32> to vector<16x256xbf16>
    %c80_117 = arith.constant 80 : index
    %c0_118 = arith.constant 0 : index
    %204 = vector.load %arg4[%c80_117, %c0_118] : memref<256x256xbf16, #tpu.memory_space<vmem>>, vector<16x256xbf16>
    tpu.vector_store %arg4[%c80_117, %c0_118], %203 {strides = array<i32>} : memref<256x256xbf16, #tpu.memory_space<vmem>>, vector<16x256xbf16>,
    %c255_i32_119 = arith.constant 255 : i32
    %205 = tpu.dynamic_rotate %150 by %c255_i32_119 dim 1 : vector<8x256xf32>, i32 -> vector<8x256xf32>
    %c120_120 = arith.constant 120 : index
    %c0_121 = arith.constant 0 : index
    %206 = vector.load %arg2[%c120_120, %c0_121] : memref<224x256xf32, #tpu.memory_space<vmem>>, vector<8x256xf32>
    %207 = arith.mulf %205, %206 : vector<8x256xf32>
    %208 = tpu.concatenate %150, %207 in 0 : vector<8x256xf32>, vector<8x256xf32> -> vector<16x256xf32>
    %209 = arith.truncf %208 : vector<16x256xf32> to vector<16x256xbf16>
    %c96_122 = arith.constant 96 : index
    %c0_123 = arith.constant 0 : index
    %210 = vector.load %arg4[%c96_122, %c0_123] : memref<256x256xbf16, #tpu.memory_space<vmem>>, vector<16x256xbf16>
    tpu.vector_store %arg4[%c96_122, %c0_123], %209 {strides = array<i32>} : memref<256x256xbf16, #tpu.memory_space<vmem>>, vector<16x256xbf16>,
    %c254_i32_124 = arith.constant 254 : i32
    %211 = tpu.dynamic_rotate %150 by %c254_i32_124 dim 1 : vector<8x256xf32>, i32 -> vector<8x256xf32>
    %c128_125 = arith.constant 128 : index
    %c0_126 = arith.constant 0 : index
    %212 = vector.load %arg2[%c128_125, %c0_126] : memref<224x256xf32, #tpu.memory_space<vmem>>, vector<8x256xf32>
    %213 = arith.mulf %211, %212 : vector<8x256xf32>
    %c242_i32_127 = arith.constant 242 : i32
    %214 = tpu.dynamic_rotate %150 by %c242_i32_127 dim 1 : vector<8x256xf32>, i32 -> vector<8x256xf32>
    %c136_128 = arith.constant 136 : index
    %c0_129 = arith.constant 0 : index
    %215 = vector.load %arg2[%c136_128, %c0_129] : memref<224x256xf32, #tpu.memory_space<vmem>>, vector<8x256xf32>
    %216 = arith.mulf %214, %215 : vector<8x256xf32>
    %217 = tpu.concatenate %213, %216 in 0 : vector<8x256xf32>, vector<8x256xf32> -> vector<16x256xf32>
    %218 = arith.truncf %217 : vector<16x256xf32> to vector<16x256xbf16>
    %c112_130 = arith.constant 112 : index
    %c0_131 = arith.constant 0 : index
    %219 = vector.load %arg4[%c112_130, %c0_131] : memref<256x256xbf16, #tpu.memory_space<vmem>>, vector<16x256xbf16>
    tpu.vector_store %arg4[%c112_130, %c0_131], %218 {strides = array<i32>} : memref<256x256xbf16, #tpu.memory_space<vmem>>, vector<16x256xbf16>,
    %c241_i32_132 = arith.constant 241 : i32
    %220 = tpu.dynamic_rotate %150 by %c241_i32_132 dim 1 : vector<8x256xf32>, i32 -> vector<8x256xf32>
    %c144_133 = arith.constant 144 : index
    %c0_134 = arith.constant 0 : index
    %221 = vector.load %arg2[%c144_133, %c0_134] : memref<224x256xf32, #tpu.memory_space<vmem>>, vector<8x256xf32>
    %222 = arith.mulf %220, %221 : vector<8x256xf32>
    %c240_i32_135 = arith.constant 240 : i32
    %223 = tpu.dynamic_rotate %150 by %c240_i32_135 dim 1 : vector<8x256xf32>, i32 -> vector<8x256xf32>
    %c152_136 = arith.constant 152 : index
    %c0_137 = arith.constant 0 : index
    %224 = vector.load %arg2[%c152_136, %c0_137] : memref<224x256xf32, #tpu.memory_space<vmem>>, vector<8x256xf32>
    %225 = arith.mulf %223, %224 : vector<8x256xf32>
    %226 = tpu.concatenate %222, %225 in 0 : vector<8x256xf32>, vector<8x256xf32> -> vector<16x256xf32>
    %227 = arith.truncf %226 : vector<16x256xf32> to vector<16x256xbf16>
    %c128_138 = arith.constant 128 : index
    %c0_139 = arith.constant 0 : index
    %228 = vector.load %arg4[%c128_138, %c0_139] : memref<256x256xbf16, #tpu.memory_space<vmem>>, vector<16x256xbf16>
    tpu.vector_store %arg4[%c128_138, %c0_139], %227 {strides = array<i32>} : memref<256x256xbf16, #tpu.memory_space<vmem>>, vector<16x256xbf16>,
    %c239_i32_140 = arith.constant 239 : i32
    %229 = tpu.dynamic_rotate %150 by %c239_i32_140 dim 1 : vector<8x256xf32>, i32 -> vector<8x256xf32>
    %c160_141 = arith.constant 160 : index
    %c0_142 = arith.constant 0 : index
    %230 = vector.load %arg2[%c160_141, %c0_142] : memref<224x256xf32, #tpu.memory_space<vmem>>, vector<8x256xf32>
    %231 = arith.mulf %229, %230 : vector<8x256xf32>
    %c238_i32_143 = arith.constant 238 : i32
    %232 = tpu.dynamic_rotate %150 by %c238_i32_143 dim 1 : vector<8x256xf32>, i32 -> vector<8x256xf32>
    %c168_144 = arith.constant 168 : index
    %c0_145 = arith.constant 0 : index
    %233 = vector.load %arg2[%c168_144, %c0_145] : memref<224x256xf32, #tpu.memory_space<vmem>>, vector<8x256xf32>
    %234 = arith.mulf %232, %233 : vector<8x256xf32>
    %235 = tpu.concatenate %231, %234 in 0 : vector<8x256xf32>, vector<8x256xf32> -> vector<16x256xf32>
    %236 = arith.truncf %235 : vector<16x256xf32> to vector<16x256xbf16>
    %c144_146 = arith.constant 144 : index
    %c0_147 = arith.constant 0 : index
    %237 = vector.load %arg4[%c144_146, %c0_147] : memref<256x256xbf16, #tpu.memory_space<vmem>>, vector<16x256xbf16>
    tpu.vector_store %arg4[%c144_146, %c0_147], %236 {strides = array<i32>} : memref<256x256xbf16, #tpu.memory_space<vmem>>, vector<16x256xbf16>,
    %c226_i32_148 = arith.constant 226 : i32
    %238 = tpu.dynamic_rotate %150 by %c226_i32_148 dim 1 : vector<8x256xf32>, i32 -> vector<8x256xf32>
    %c176_149 = arith.constant 176 : index
    %c0_150 = arith.constant 0 : index
    %239 = vector.load %arg2[%c176_149, %c0_150] : memref<224x256xf32, #tpu.memory_space<vmem>>, vector<8x256xf32>
    %240 = arith.mulf %238, %239 : vector<8x256xf32>
    %c225_i32_151 = arith.constant 225 : i32
    %241 = tpu.dynamic_rotate %150 by %c225_i32_151 dim 1 : vector<8x256xf32>, i32 -> vector<8x256xf32>
    %c184_152 = arith.constant 184 : index
    %c0_153 = arith.constant 0 : index
    %242 = vector.load %arg2[%c184_152, %c0_153] : memref<224x256xf32, #tpu.memory_space<vmem>>, vector<8x256xf32>
    %243 = arith.mulf %241, %242 : vector<8x256xf32>
    %244 = tpu.concatenate %240, %243 in 0 : vector<8x256xf32>, vector<8x256xf32> -> vector<16x256xf32>
    %245 = arith.truncf %244 : vector<16x256xf32> to vector<16x256xbf16>
    %c160_154 = arith.constant 160 : index
    %c0_155 = arith.constant 0 : index
    %246 = vector.load %arg4[%c160_154, %c0_155] : memref<256x256xbf16, #tpu.memory_space<vmem>>, vector<16x256xbf16>
    tpu.vector_store %arg4[%c160_154, %c0_155], %245 {strides = array<i32>} : memref<256x256xbf16, #tpu.memory_space<vmem>>, vector<16x256xbf16>,
    %c224_i32_156 = arith.constant 224 : i32
    %247 = tpu.dynamic_rotate %150 by %c224_i32_156 dim 1 : vector<8x256xf32>, i32 -> vector<8x256xf32>
    %c192_157 = arith.constant 192 : index
    %c0_158 = arith.constant 0 : index
    %248 = vector.load %arg2[%c192_157, %c0_158] : memref<224x256xf32, #tpu.memory_space<vmem>>, vector<8x256xf32>
    %249 = arith.mulf %247, %248 : vector<8x256xf32>
    %c223_i32_159 = arith.constant 223 : i32
    %250 = tpu.dynamic_rotate %150 by %c223_i32_159 dim 1 : vector<8x256xf32>, i32 -> vector<8x256xf32>
    %c200_160 = arith.constant 200 : index
    %c0_161 = arith.constant 0 : index
    %251 = vector.load %arg2[%c200_160, %c0_161] : memref<224x256xf32, #tpu.memory_space<vmem>>, vector<8x256xf32>
    %252 = arith.mulf %250, %251 : vector<8x256xf32>
    %253 = tpu.concatenate %249, %252 in 0 : vector<8x256xf32>, vector<8x256xf32> -> vector<16x256xf32>
    %254 = arith.truncf %253 : vector<16x256xf32> to vector<16x256xbf16>
    %c176_162 = arith.constant 176 : index
    %c0_163 = arith.constant 0 : index
    %255 = vector.load %arg4[%c176_162, %c0_163] : memref<256x256xbf16, #tpu.memory_space<vmem>>, vector<16x256xbf16>
    tpu.vector_store %arg4[%c176_162, %c0_163], %254 {strides = array<i32>} : memref<256x256xbf16, #tpu.memory_space<vmem>>, vector<16x256xbf16>,
    %c222_i32_164 = arith.constant 222 : i32
    %256 = tpu.dynamic_rotate %150 by %c222_i32_164 dim 1 : vector<8x256xf32>, i32 -> vector<8x256xf32>
    %c208_165 = arith.constant 208 : index
    %c0_166 = arith.constant 0 : index
    %257 = vector.load %arg2[%c208_165, %c0_166] : memref<224x256xf32, #tpu.memory_space<vmem>>, vector<8x256xf32>
    %258 = arith.mulf %256, %257 : vector<8x256xf32>
    %cst_167 = arith.constant 0.000000e+00 : f32
    %259 = vector.broadcast %cst_167 : f32 to vector<8x256xf32>
    %260 = tpu.concatenate %258, %259 in 0 : vector<8x256xf32>, vector<8x256xf32> -> vector<16x256xf32>
    %261 = arith.truncf %260 : vector<16x256xf32> to vector<16x256xbf16>
    %c192_168 = arith.constant 192 : index
    %c0_169 = arith.constant 0 : index
    %262 = vector.load %arg4[%c192_168, %c0_169] : memref<256x256xbf16, #tpu.memory_space<vmem>>, vector<16x256xbf16>
    tpu.vector_store %arg4[%c192_168, %c0_169], %261 {strides = array<i32>} : memref<256x256xbf16, #tpu.memory_space<vmem>>, vector<16x256xbf16>,
    %c0_170 = arith.constant 0 : index
    %c0_171 = arith.constant 0 : index
    %263 = vector.load %arg4[%c0_170, %c0_171] : memref<256x256xbf16, #tpu.memory_space<vmem>>, vector<256x256xbf16>
    %cst_172 = arith.constant dense<0.000000e+00> : vector<8x256xf32>
    %264 = tpu.matmul %7, %263, %cst_172 {dimension_numbers = #tpu.dot_dimension_numbers<[1], [0], [0], [1], [0, 0, 1, 1], [], []>} : vector<8x256xbf16>, vector<256x256xbf16>, vector<8x256xf32> -> vector<8x256xf32>
    %c4_i32_173 = arith.constant 4 : i32
    %265 = tpu.dynamic_rotate %264 by %c4_i32_173 dim 0 : vector<8x256xf32>, i32 -> vector<8x256xf32>
    %266 = arith.addf %264, %265 : vector<8x256xf32>
    %cst_174 = arith.constant dense<0.000000e+00> : vector<8xf32>
    %267 = vector.multi_reduction <add>, %266, %cst_174 [1] : vector<8x256xf32> to vector<8xf32>
    %268 = vector.shape_cast %267 : vector<8xf32> to vector<8x1xf32>
    %cst_175 = arith.constant 5.120000e+02 : f32
    %269 = vector.broadcast %cst_175 : f32 to vector<8x1xf32>
    %270 = arith.divf %268, %269 : vector<8x1xf32>
    %271 = vector.broadcast %270 : vector<8x1xf32> to vector<8x256xf32>
    %272 = arith.subf %264, %271 : vector<8x256xf32>
    %273 = arith.mulf %272, %272 : vector<8x256xf32>
    %c4_i32_176 = arith.constant 4 : i32
    %274 = tpu.dynamic_rotate %273 by %c4_i32_176 dim 0 : vector<8x256xf32>, i32 -> vector<8x256xf32>
    %275 = arith.addf %273, %274 : vector<8x256xf32>
    %cst_177 = arith.constant dense<0.000000e+00> : vector<8xf32>
    %276 = vector.multi_reduction <add>, %275, %cst_177 [1] : vector<8x256xf32> to vector<8xf32>
    %277 = vector.shape_cast %276 : vector<8xf32> to vector<8x1xf32>
    %cst_178 = arith.constant 5.120000e+02 : f32
    %278 = vector.broadcast %cst_178 : f32 to vector<8x1xf32>
    %279 = arith.divf %277, %278 : vector<8x1xf32>
    %cst_179 = arith.constant 9.99999974E-6 : f32
    %280 = vector.broadcast %cst_179 : f32 to vector<8x1xf32>
    %281 = arith.addf %279, %280 : vector<8x1xf32>
    %282 = math.rsqrt %281 : vector<8x1xf32>
    %283 = arith.mulf %10, %282 : vector<8x1xf32>
    %284 = vector.broadcast %283 : vector<8x1xf32> to vector<8x256xf32>
    %285 = arith.mulf %272, %284 : vector<8x256xf32>
    %286 = vector.broadcast %11 : vector<8x1xf32> to vector<8x256xf32>
    %287 = arith.addf %285, %286 : vector<8x256xf32>
    %288 = arith.addf %287, %1 : vector<8x256xf32>
    %c0_180 = arith.constant 0 : index
    %c0_181 = arith.constant 0 : index
    %c0_182 = arith.constant 0 : index
    %289 = vector.load %arg3[%c0_180, %c0_181, %c0_182] : memref<1x8x256xf32, #tpu.memory_space<vmem>>, vector<1x8x256xf32>
    %290 = vector.shape_cast %289 : vector<1x8x256xf32> to vector<8x256xf32>
    %291 = vector.shape_cast %288 : vector<8x256xf32> to vector<1x8x256xf32>
    tpu.vector_store %arg3[%c0_180, %c0_181, %c0_182], %291 {strides = array<i32>} : memref<1x8x256xf32, #tpu.memory_space<vmem>>, vector<1x8x256xf32>,
    return
  }
  func.func @transform_0(%arg0: i32) -> (i32, i32, i32) {
    %c0_i32 = arith.constant 0 : i32
    %c0_i32_0 = arith.constant 0 : i32
    %c0_i32_1 = arith.constant 0 : i32
    return %arg0, %c0_i32, %c0_i32_0 : i32, i32, i32
  }
  func.func @transform_1(%arg0: i32) -> (i32, i32) {
    %c0_i32 = arith.constant 0 : i32
    %c0_i32_0 = arith.constant 0 : i32
    %c0_i32_1 = arith.constant 0 : i32
    return %c0_i32, %c0_i32_0 : i32, i32
  }
  func.func @transform_2(%arg0: i32) -> (i32, i32, i32) {
    %c0_i32 = arith.constant 0 : i32
    %c0_i32_0 = arith.constant 0 : i32
    %c0_i32_1 = arith.constant 0 : i32
    return %arg0, %c0_i32, %c0_i32_0 : i32, i32, i32
  }
}

</mosaic_0001>

<llo_original>
// kernel: resblock2d.1
$region0: #{resblock2d.1}
  #allocation0 [shape = 'u32[]', space=smem, size = 0x4, offset = 0x4, fixed_abs, tag = 'smem constant byte address 0x4 - core index']
  #allocation1 [shape = 'u32[72,128]{1,0:T(1,128)}', space=vmem, size = 0x9000, scoped, tag = 'internal scratch']
  #allocation2 [shape = 'bf16[256,256]{1,0:T(8,128)(2,1)}', space=vmem, size = 0x20000, scoped, tag = 'scratch operand']
  %s0 = inlined_call_operand.vmem [shape: f32[1,8,256], index: 0, kind: input, shape index: {}]
  %s1 = inlined_call_operand.hbm [shape: f32[224,256], index: 1, kind: input, shape index: {}]
  %s2 = inlined_call_operand.vmem [shape: f32[1,8,256], index: 2, kind: output, shape index: {}]
  %s3 = sld [smem:[#allocation0]]
  $region22: #{resblock2d.1} parent=0
    _
  %s5 = ssub.s32 1, %s3
  %s6 = scalar_select 0, %s5, %s3
  $region1: #{resblock2d.1} parent=0
    #allocation3 [shape = 'u8[229376]{0}', space=vmem, size = 0x38000, scoped, tag = 'input window, operand 1, single buffered']
    #allocation4 [shape = 's32[1]{0}', space=sflag, size = 0x4, scoped, tag = 'scoped memory for resblock2d.1']
    %7 = vsyncpa [#allocation4], 0
    // Predicated region
    $region2: #{resblock2d.1} parent=1 // pred_check
      _
    $region3: #{resblock2d.1} parent=1 // pred_check_branch
      %9 = sbr.rel (0) target = $region5
    $region4: #{resblock2d.1} parent=1 // pred_region
      _
    $region5: #{resblock2d.1} parent=1 // pred_fallthru
      _
    // Predicated region
    $region6: #{resblock2d.1} parent=1 // pred_check
      _
    $region7: #{resblock2d.1} parent=1 // pred_check_branch
      %11 = sbr.rel (0) target = $region9
    $region8: #{resblock2d.1} parent=1 // pred_region
      %13 = vsyncadd [#allocation4], 0
      %s14 = sshll.u32 %s1, 4
      %s15 = int_to_ptr.hbm [resolvable:$true] %s14
      %s16 = sshll.u32 [#allocation3], 4
      %s17 = int_to_ptr.vmem [resolvable:$true] %s16
      %22 = dma.hbm_to_vmem [thread:$0]  %s15, 7168, %s17, [#allocation4], 256, 256, 16
    $region9: #{resblock2d.1} parent=1 // pred_fallthru
      _
    // Predicated region
    $region10: #{resblock2d.1} parent=1 // pred_check
      _
    $region11: #{resblock2d.1} parent=1 // pred_check_branch
      %24 = sbr.rel (0) target = $region13
    $region12: #{resblock2d.1} parent=1 // pred_region
      %26 = dma.done [#allocation4], 7168
    $region13: #{resblock2d.1} parent=1 // pred_fallthru
      _
    %v28 = vld [vmem:[%s0] sm:$0xff]
    %v29 = vld [vmem:[%s0 + $0x8] sm:$0xff]
    %30 = vst [vmem:[#allocation2 + $0xd0] sm:$0xff] 0
    %31 = vst [vmem:[#allocation2 + $0xd8] sm:$0xff] 0
    %32 = vst [vmem:[#allocation2 + $0xe0] sm:$0xff] 0
    %33 = vst [vmem:[#allocation2 + $0xe8] sm:$0xff] 0
    %34 = vst [vmem:[#allocation2 + $0xf0] sm:$0xff] 0
    %35 = vst [vmem:[#allocation2 + $0xf8] sm:$0xff] 0
    %v36 = vld [vmem:[#allocation3] sm:$0xff]
    %v37 = vld [vmem:[#allocation3 + $0x8] sm:$0xff]
    %v38 = vpack.c.bf16 %v36, %v36
    %v39 = vpack.c.bf16 %v37, %v37
    %v40 = vld [vmem:[#allocation3 + $0x10] sm:$0xff]
    %v41 = vld [vmem:[#allocation3 + $0x18] sm:$0xff]
    %v42 = vpack.c.bf16 %v40, %v40
    %v43 = vpack.c.bf16 %v41, %v41
    %v44 = vld [vmem:[#allocation3 + $0x1b0] sm:$0xff]
    %45 = vrot.lane.b32.xlu0 %v28, 34
    %v46 = vpop.permute.xlu0 %45
    %47 = vrot.lane.b32.xlu0 %v29, 34
    %v48 = vpop.permute.xlu0 %47
    %v49 = vlaneseq
    %v50 = vand.u32 %v49, 127
    %vm51 = vcmp.lt.s32.totalorder %v50, 34
    %v52 = vsel %vm51, %v46, %v48
    %v53 = vsel %vm51, %v48, %v46
    %v54 = vld [vmem:[#allocation3 + $0x20] sm:$0xff]
    %v55 = vld [vmem:[#allocation3 + $0x28] sm:$0xff]
    %v56 = vmul.f32 %v53, %v54
    %v57 = vmul.f32 %v52, %v55
    %58 = vrot.lane.b32.xlu0 %v28, 33
    %v59 = vpop.permute.xlu0 %58
    %60 = vrot.lane.b32.xlu0 %v29, 33
    %v61 = vpop.permute.xlu0 %60
    %vm62 = vcmp.lt.s32.totalorder %v50, 33
    %v63 = vsel %vm62, %v59, %v61
    %v64 = vsel %vm62, %v61, %v59
    %v65 = vld [vmem:[#allocation3 + $0x30] sm:$0xff]
    %v66 = vld [vmem:[#allocation3 + $0x38] sm:$0xff]
    %v67 = vmul.f32 %v64, %v65
    %v68 = vmul.f32 %v63, %v66
    %v69 = vpack.c.bf16 %v57, %v56
    %v70 = vpack.c.bf16 %v68, %v67
    %71 = vst [vmem:[#allocation2] sm:$0xff] %v69
    %72 = vst [vmem:[#allocation2 + $0x8] sm:$0xff] %v70
    %73 = vrot.lane.b32.xlu0 %v28, 32
    %v74 = vpop.permute.xlu0 %73
    %75 = vrot.lane.b32.xlu0 %v29, 32
    %v76 = vpop.permute.xlu0 %75
    %vm77 = vcmp.lt.s32.totalorder %v50, 32
    %v78 = vsel %vm77, %v74, %v76
    %v79 = vsel %vm77, %v76, %v74
    %v80 = vld [vmem:[#allocation3 + $0x40] sm:$0xff]
    %v81 = vld [vmem:[#allocation3 + $0x48] sm:$0xff]
    %v82 = vmul.f32 %v79, %v80
    %v83 = vmul.f32 %v78, %v81
    %84 = vrot.lane.b32.xlu0 %v28, 31
    %v85 = vpop.permute.xlu0 %84
    %86 = vrot.lane.b32.xlu0 %v29, 31
    %v87 = vpop.permute.xlu0 %86
    %vm88 = vcmp.lt.s32.totalorder %v50, 31
    %v89 = vsel %vm88, %v85, %v87
    %v90 = vsel %vm88, %v87, %v85
    %v91 = vld [vmem:[#allocation3 + $0x50] sm:$0xff]
    %v92 = vld [vmem:[#allocation3 + $0x58] sm:$0xff]
    %v93 = vmul.f32 %v90, %v91
    %v94 = vmul.f32 %v89, %v92
    %v95 = vpack.c.bf16 %v83, %v82
    %v96 = vpack.c.bf16 %v94, %v93
    %97 = vst [vmem:[#allocation2 + $0x10] sm:$0xff] %v95
    %98 = vst [vmem:[#allocation2 + $0x18] sm:$0xff] %v96
    %99 = vrot.lane.b32.xlu0 %v28, 30
    %v100 = vpop.permute.xlu0 %99
    %101 = vrot.lane.b32.xlu0 %v29, 30
    %v102 = vpop.permute.xlu0 %101
    %vm103 = vcmp.lt.s32.totalorder %v50, 30
    %v104 = vsel %vm103, %v100, %v102
    %v105 = vsel %vm103, %v102, %v100
    %v106 = vld [vmem:[#allocation3 + $0x60] sm:$0xff]
    %v107 = vld [vmem:[#allocation3 + $0x68] sm:$0xff]
    %v108 = vmul.f32 %v105, %v106
    %v109 = vmul.f32 %v104, %v107
    %110 = vrot.lane.b32.xlu0 %v28, 18
    %v111 = vpop.permute.xlu0 %110
    %112 = vrot.lane.b32.xlu0 %v29, 18
    %v113 = vpop.permute.xlu0 %112
    %vm114 = vcmp.lt.s32.totalorder %v50, 18
    %v115 = vsel %vm114, %v111, %v113
    %v116 = vsel %vm114, %v113, %v111
    %v117 = vld [vmem:[#allocation3 + $0x70] sm:$0xff]
    %v118 = vld [vmem:[#allocation3 + $0x78] sm:$0xff]
    %v119 = vmul.f32 %v116, %v117
    %v120 = vmul.f32 %v115, %v118
    %v121 = vpack.c.bf16 %v109, %v108
    %v122 = vpack.c.bf16 %v120, %v119
    %123 = vst [vmem:[#allocation2 + $0x20] sm:$0xff] %v121
    %124 = vst [vmem:[#allocation2 + $0x28] sm:$0xff] %v122
    %125 = vrot.lane.b32.xlu0 %v28, 17
    %v126 = vpop.permute.xlu0 %125
    %127 = vrot.lane.b32.xlu0 %v29, 17
    %v128 = vpop.permute.xlu0 %127
    %vm129 = vcmp.lt.s32.totalorder %v50, 17
    %v130 = vsel %vm129, %v126, %v128
    %v131 = vsel %vm129, %v128, %v126
    %v132 = vld [vmem:[#allocation3 + $0x80] sm:$0xff]
    %v133 = vld [vmem:[#allocation3 + $0x88] sm:$0xff]
    %v134 = vmul.f32 %v131, %v132
    %v135 = vmul.f32 %v130, %v133
    %136 = vrot.lane.b32.xlu0 %v28, 16
    %v137 = vpop.permute.xlu0 %136
    %138 = vrot.lane.b32.xlu0 %v29, 16
    %v139 = vpop.permute.xlu0 %138
    %vm140 = vcmp.lt.s32.totalorder %v50, 16
    %v141 = vsel %vm140, %v137, %v139
    %v142 = vsel %vm140, %v139, %v137
    %v143 = vld [vmem:[#allocation3 + $0x90] sm:$0xff]
    %v144 = vld [vmem:[#allocation3 + $0x98] sm:$0xff]
    %v145 = vmul.f32 %v142, %v143
    %v146 = vmul.f32 %v141, %v144
    %v147 = vpack.c.bf16 %v135, %v134
    %v148 = vpack.c.bf16 %v146, %v145
    %149 = vst [vmem:[#allocation2 + $0x30] sm:$0xff] %v147
    %150 = vst [vmem:[#allocation2 + $0x38] sm:$0xff] %v148
    %151 = vrot.lane.b32.xlu0 %v28, 15
    %v152 = vpop.permute.xlu0 %151
    %153 = vrot.lane.b32.xlu0 %v29, 15
    %v154 = vpop.permute.xlu0 %153
    %vm155 = vcmp.lt.s32.totalorder %v50, 15
    %v156 = vsel %vm155, %v152, %v154
    %v157 = vsel %vm155, %v154, %v152
    %v158 = vld [vmem:[#allocation3 + $0xa0] sm:$0xff]
    %v159 = vld [vmem:[#allocation3 + $0xa8] sm:$0xff]
    %v160 = vmul.f32 %v157, %v158
    %v161 = vmul.f32 %v156, %v159
    %162 = vrot.lane.b32.xlu0 %v28, 14
    %v163 = vpop.permute.xlu0 %162
    %164 = vrot.lane.b32.xlu0 %v29, 14
    %v165 = vpop.permute.xlu0 %164
    %vm166 = vcmp.lt.s32.totalorder %v50, 14
    %v167 = vsel %vm166, %v163, %v165
    %v168 = vsel %vm166, %v165, %v163
    %v169 = vld [vmem:[#allocation3 + $0xb0] sm:$0xff]
    %v170 = vld [vmem:[#allocation3 + $0xb8] sm:$0xff]
    %v171 = vmul.f32 %v168, %v169
    %v172 = vmul.f32 %v167, %v170
    %v173 = vpack.c.bf16 %v161, %v160
    %v174 = vpack.c.bf16 %v172, %v171
    %175 = vst [vmem:[#allocation2 + $0x40] sm:$0xff] %v173
    %176 = vst [vmem:[#allocation2 + $0x48] sm:$0xff] %v174
    %177 = vrot.lane.b32.xlu0 %v28, 2
    %v178 = vpop.permute.xlu0 %177
    %179 = vrot.lane.b32.xlu0 %v29, 2
    %v180 = vpop.permute.xlu0 %179
    %vm181 = vcmp.lt.s32.totalorder %v50, 2
    %v182 = vsel %vm181, %v178, %v180
    %v183 = vsel %vm181, %v180, %v178
    %v184 = vld [vmem:[#allocation3 + $0xc0] sm:$0xff]
    %v185 = vld [vmem:[#allocation3 + $0xc8] sm:$0xff]
    %v186 = vmul.f32 %v183, %v184
    %v187 = vmul.f32 %v182, %v185
    %188 = vrot.lane.b32.xlu0 %v28, 1
    %v189 = vpop.permute.xlu0 %188
    %190 = vrot.lane.b32.xlu0 %v29, 1
    %v191 = vpop.permute.xlu0 %190
    %vm192 = vcmp.lt.s32.totalorder %v50, 1
    %v193 = vsel %vm192, %v189, %v191
    %v194 = vsel %vm192, %v191, %v189
    %v195 = vld [vmem:[#allocation3 + $0xd0] sm:$0xff]
    %v196 = vld [vmem:[#allocation3 + $0xd8] sm:$0xff]
    %v197 = vmul.f32 %v194, %v195
    %v198 = vmul.f32 %v193, %v196
    %v199 = vpack.c.bf16 %v187, %v186
    %v200 = vpack.c.bf16 %v198, %v197
    %201 = vst [vmem:[#allocation2 + $0x50] sm:$0xff] %v199
    %202 = vst [vmem:[#allocation2 + $0x58] sm:$0xff] %v200
    %203 = vrot.lane.b32.xlu0 %v28, 127
    %v204 = vpop.permute.xlu0 %203
    %205 = vrot.lane.b32.xlu0 %v29, 127
    %v206 = vpop.permute.xlu0 %205
    %vm207 = vcmp.lt.s32.totalorder %v50, 127
    %v208 = vsel %vm207, %v204, %v206
    %v209 = vsel %vm207, %v206, %v204
    %v210 = vld [vmem:[#allocation3 + $0xf0] sm:$0xff]
    %v211 = vld [vmem:[#allocation3 + $0xf8] sm:$0xff]
    %v212 = vmul.f32 %v208, %v210
    %v213 = vmul.f32 %v209, %v211
    %v214 = vpack.c.bf16 %v29, %v28
    %v215 = vpack.c.bf16 %v213, %v212
    %216 = vst [vmem:[#allocation2 + $0x60] sm:$0xff] %v214
    %217 = vst [vmem:[#allocation2 + $0x68] sm:$0xff] %v215
    %218 = vrot.lane.b32.xlu0 %v28, 126
    %v219 = vpop.permute.xlu0 %218
    %220 = vrot.lane.b32.xlu0 %v29, 126
    %v221 = vpop.permute.xlu0 %220
    %vm222 = vcmp.lt.s32.totalorder %v50, 126
    %v223 = vsel %vm222, %v219, %v221
    %v224 = vsel %vm222, %v221, %v219
    %v225 = vld [vmem:[#allocation3 + $0x100] sm:$0xff]
    %v226 = vld [vmem:[#allocation3 + $0x108] sm:$0xff]
    %v227 = vmul.f32 %v223, %v225
    %v228 = vmul.f32 %v224, %v226
    %229 = vrot.lane.b32.xlu0 %v28, 114
    %v230 = vpop.permute.xlu0 %229
    %231 = vrot.lane.b32.xlu0 %v29, 114
    %v232 = vpop.permute.xlu0 %231
    %vm233 = vcmp.lt.s32.totalorder %v50, 114
    %v234 = vsel %vm233, %v230, %v232
    %v235 = vsel %vm233, %v232, %v230
    %v236 = vld [vmem:[#allocation3 + $0x110] sm:$0xff]
    %v237 = vld [vmem:[#allocation3 + $0x118] sm:$0xff]
    %v238 = vmul.f32 %v234, %v236
    %v239 = vmul.f32 %v235, %v237
    %v240 = vpack.c.bf16 %v228, %v227
    %v241 = vpack.c.bf16 %v239, %v238
    %242 = vst [vmem:[#allocation2 + $0x70] sm:$0xff] %v240
    %243 = vst [vmem:[#allocation2 + $0x78] sm:$0xff] %v241
    %244 = vrot.lane.b32.xlu0 %v28, 113
    %v245 = vpop.permute.xlu0 %244
    %246 = vrot.lane.b32.xlu0 %v29, 113
    %v247 = vpop.permute.xlu0 %246
    %vm248 = vcmp.lt.s32.totalorder %v50, 113
    %v249 = vsel %vm248, %v245, %v247
    %v250 = vsel %vm248, %v247, %v245
    %v251 = vld [vmem:[#allocation3 + $0x120] sm:$0xff]
    %v252 = vld [vmem:[#allocation3 + $0x128] sm:$0xff]
    %v253 = vmul.f32 %v249, %v251
    %v254 = vmul.f32 %v250, %v252
    %255 = vrot.lane.b32.xlu0 %v28, 112
    %v256 = vpop.permute.xlu0 %255
    %257 = vrot.lane.b32.xlu0 %v29, 112
    %v258 = vpop.permute.xlu0 %257
    %vm259 = vcmp.lt.s32.totalorder %v50, 112
    %v260 = vsel %vm259, %v256, %v258
    %v261 = vsel %vm259, %v258, %v256
    %v262 = vld [vmem:[#allocation3 + $0x130] sm:$0xff]
    %v263 = vld [vmem:[#allocation3 + $0x138] sm:$0xff]
    %v264 = vmul.f32 %v260, %v262
    %v265 = vmul.f32 %v261, %v263
    %v266 = vpack.c.bf16 %v254, %v253
    %v267 = vpack.c.bf16 %v265, %v264
    %268 = vst [vmem:[#allocation2 + $0x80] sm:$0xff] %v266
    %269 = vst [vmem:[#allocation2 + $0x88] sm:$0xff] %v267
    %270 = vrot.lane.b32.xlu0 %v28, 111
    %v271 = vpop.permute.xlu0 %270
    %272 = vrot.lane.b32.xlu0 %v29, 111
    %v273 = vpop.permute.xlu0 %272
    %vm274 = vcmp.lt.s32.totalorder %v50, 111
    %v275 = vsel %vm274, %v271, %v273
    %v276 = vsel %vm274, %v273, %v271
    %v277 = vld [vmem:[#allocation3 + $0x140] sm:$0xff]
    %v278 = vld [vmem:[#allocation3 + $0x148] sm:$0xff]
    %v279 = vmul.f32 %v275, %v277
    %v280 = vmul.f32 %v276, %v278
    %281 = vrot.lane.b32.xlu0 %v28, 110
    %v282 = vpop.permute.xlu0 %281
    %283 = vrot.lane.b32.xlu0 %v29, 110
    %v284 = vpop.permute.xlu0 %283
    %vm285 = vcmp.lt.s32.totalorder %v50, 110
    %v286 = vsel %vm285, %v282, %v284
    %v287 = vsel %vm285, %v284, %v282
    %v288 = vld [vmem:[#allocation3 + $0x150] sm:$0xff]
    %v289 = vld [vmem:[#allocation3 + $0x158] sm:$0xff]
    %v290 = vmul.f32 %v286, %v288
    %v291 = vmul.f32 %v287, %v289
    %v292 = vpack.c.bf16 %v280, %v279
    %v293 = vpack.c.bf16 %v291, %v290
    %294 = vst [vmem:[#allocation2 + $0x90] sm:$0xff] %v292
    %295 = vst [vmem:[#allocation2 + $0x98] sm:$0xff] %v293
    %296 = vrot.lane.b32.xlu0 %v28, 98
    %v297 = vpop.permute.xlu0 %296
    %298 = vrot.lane.b32.xlu0 %v29, 98
    %v299 = vpop.permute.xlu0 %298
    %vm300 = vcmp.lt.s32.totalorder %v50, 98
    %v301 = vsel %vm300, %v297, %v299
    %v302 = vsel %vm300, %v299, %v297
    %v303 = vld [vmem:[#allocation3 + $0x160] sm:$0xff]
    %v304 = vld [vmem:[#allocation3 + $0x168] sm:$0xff]
    %v305 = vmul.f32 %v301, %v303
    %v306 = vmul.f32 %v302, %v304
    %307 = vrot.lane.b32.xlu0 %v28, 97
    %v308 = vpop.permute.xlu0 %307
    %309 = vrot.lane.b32.xlu0 %v29, 97
    %v310 = vpop.permute.xlu0 %309
    %vm311 = vcmp.lt.s32.totalorder %v50, 97
    %v312 = vsel %vm311, %v308, %v310
    %v313 = vsel %vm311, %v310, %v308
    %v314 = vld [vmem:[#allocation3 + $0x170] sm:$0xff]
    %v315 = vld [vmem:[#allocation3 + $0x178] sm:$0xff]
    %v316 = vmul.f32 %v312, %v314
    %v317 = vmul.f32 %v313, %v315
    %v318 = vpack.c.bf16 %v306, %v305
    %v319 = vpack.c.bf16 %v317, %v316
    %320 = vst [vmem:[#allocation2 + $0xa0] sm:$0xff] %v318
    %321 = vst [vmem:[#allocation2 + $0xa8] sm:$0xff] %v319
    %322 = vrot.lane.b32.xlu0 %v28, 96
    %v323 = vpop.permute.xlu0 %322
    %324 = vrot.lane.b32.xlu0 %v29, 96
    %v325 = vpop.permute.xlu0 %324
    %vm326 = vcmp.lt.s32.totalorder %v50, 96
    %v327 = vsel %vm326, %v323, %v325
    %v328 = vsel %vm326, %v325, %v323
    %v329 = vld [vmem:[#allocation3 + $0x180] sm:$0xff]
    %v330 = vld [vmem:[#allocation3 + $0x188] sm:$0xff]
    %v331 = vmul.f32 %v327, %v329
    %v332 = vmul.f32 %v328, %v330
    %333 = vrot.lane.b32.xlu0 %v28, 95
    %v334 = vpop.permute.xlu0 %333
    %335 = vrot.lane.b32.xlu0 %v29, 95
    %v336 = vpop.permute.xlu0 %335
    %vm337 = vcmp.lt.s32.totalorder %v50, 95
    %v338 = vsel %vm337, %v334, %v336
    %v339 = vsel %vm337, %v336, %v334
    %v340 = vld [vmem:[#allocation3 + $0x190] sm:$0xff]
    %v341 = vld [vmem:[#allocation3 + $0x198] sm:$0xff]
    %v342 = vmul.f32 %v338, %v340
    %v343 = vmul.f32 %v339, %v341
    %v344 = vpack.c.bf16 %v332, %v331
    %v345 = vpack.c.bf16 %v343, %v342
    %346 = vst [vmem:[#allocation2 + $0xb0] sm:$0xff] %v344
    %347 = vst [vmem:[#allocation2 + $0xb8] sm:$0xff] %v345
    %348 = vrot.lane.b32.xlu0 %v28, 94
    %v349 = vpop.permute.xlu0 %348
    %350 = vrot.lane.b32.xlu0 %v29, 94
    %v351 = vpop.permute.xlu0 %350
    %vm352 = vcmp.lt.s32.totalorder %v50, 94
    %v353 = vsel %vm352, %v349, %v351
    %v354 = vsel %vm352, %v351, %v349
    %v355 = vld [vmem:[#allocation3 + $0x1a0] sm:$0xff]
    %v356 = vld [vmem:[#allocation3 + $0x1a8] sm:$0xff]
    %v357 = vmul.f32 %v353, %v355
    %v358 = vmul.f32 %v354, %v356
    %v359 = vpack.c.bf16 %v358, %v357
    %v360 = vpack.c.bf16 0.0, 0.0
    %361 = vst [vmem:[#allocation2 + $0xc0] sm:$0xff] %v359
    %362 = vst [vmem:[#allocation2 + $0xc8] sm:$0xff] %v360
    %v363 = vld [vmem:[#allocation2] sm:$0xff]
    %v364 = vld [vmem:[#allocation2 + $0x8] sm:$0xff]
    %v365 = vld [vmem:[#allocation2 + $0x10] sm:$0xff]
    %v366 = vld [vmem:[#allocation2 + $0x18] sm:$0xff]
    %v367 = vld [vmem:[#allocation2 + $0x20] sm:$0xff]
    %v368 = vld [vmem:[#allocation2 + $0x28] sm:$0xff]
    %v369 = vld [vmem:[#allocation2 + $0x30] sm:$0xff]
    %v370 = vld [vmem:[#allocation2 + $0x38] sm:$0xff]
    %v371 = vld [vmem:[#allocation2 + $0x40] sm:$0xff]
    %v372 = vld [vmem:[#allocation2 + $0x48] sm:$0xff]
    %v373 = vld [vmem:[#allocation2 + $0x50] sm:$0xff]
    %v374 = vld [vmem:[#allocation2 + $0x58] sm:$0xff]
    %v375 = vld [vmem:[#allocation2 + $0x60] sm:$0xff]
    %v376 = vld [vmem:[#allocation2 + $0x68] sm:$0xff]
    %v377 = vld [vmem:[#allocation2 + $0x70] sm:$0xff]
    %v378 = vld [vmem:[#allocation2 + $0x78] sm:$0xff]
    %v379 = vld [vmem:[#allocation2 + $0x80] sm:$0xff]
    %v380 = vld [vmem:[#allocation2 + $0x88] sm:$0xff]
    %v381 = vld [vmem:[#allocation2 + $0x90] sm:$0xff]
    %v382 = vld [vmem:[#allocation2 + $0x98] sm:$0xff]
    %v383 = vld [vmem:[#allocation2 + $0xa0] sm:$0xff]
    %v384 = vld [vmem:[#allocation2 + $0xa8] sm:$0xff]
    %v385 = vld [vmem:[#allocation2 + $0xb0] sm:$0xff]
    %v386 = vld [vmem:[#allocation2 + $0xb8] sm:$0xff]
    %v387 = vld [vmem:[#allocation2 + $0xc0] sm:$0xff]
    %v388 = vld [vmem:[#allocation2 + $0xc8] sm:$0xff]
    %v389 = vld [vmem:[#allocation2 + $0xd0] sm:$0xff]
    %v390 = vld [vmem:[#allocation2 + $0xd8] sm:$0xff]
    %v391 = vld [vmem:[#allocation2 + $0xe0] sm:$0xff]
    %v392 = vld [vmem:[#allocation2 + $0xe8] sm:$0xff]
    %v393 = vld [vmem:[#allocation2 + $0xf0] sm:$0xff]
    %v394 = vld [vmem:[#allocation2 + $0xf8] sm:$0xff]
    %v427 = vunpack.c.l.b16 %v363
    %v428 = vunpack.c.h.b16 %v363
    %v429 = vunpack.c.l.b16 %v364
    %v430 = vunpack.c.h.b16 %v364
    %v431 = vunpack.c.l.b16 %v365
    %v432 = vunpack.c.h.b16 %v365
    %v433 = vunpack.c.l.b16 %v366
    %v434 = vunpack.c.h.b16 %v366
    %v435 = vunpack.c.l.b16 %v367
    %v436 = vunpack.c.h.b16 %v367
    %v437 = vunpack.c.l.b16 %v368
    %v438 = vunpack.c.h.b16 %v368
    %v439 = vunpack.c.l.b16 %v369
    %v440 = vunpack.c.h.b16 %v369
    %v441 = vunpack.c.l.b16 %v370
    %v442 = vunpack.c.h.b16 %v370
    %v443 = vunpack.c.l.b16 %v371
    %v444 = vunpack.c.h.b16 %v371
    %v445 = vunpack.c.l.b16 %v372
    %v446 = vunpack.c.h.b16 %v372
    %v447 = vunpack.c.l.b16 %v373
    %v448 = vunpack.c.h.b16 %v373
    %v449 = vunpack.c.l.b16 %v374
    %v450 = vunpack.c.h.b16 %v374
    %v451 = vunpack.c.l.b16 %v375
    %v452 = vunpack.c.h.b16 %v375
    %v453 = vunpack.c.l.b16 %v376
    %v454 = vunpack.c.h.b16 %v376
    %v455 = vunpack.c.l.b16 %v377
    %v456 = vunpack.c.h.b16 %v377
    %v457 = vunpack.c.l.b16 %v378
    %v458 = vunpack.c.h.b16 %v378
    %v459 = vunpack.c.l.b16 %v379
    %v460 = vunpack.c.h.b16 %v379
    %v461 = vunpack.c.l.b16 %v380
    %v462 = vunpack.c.h.b16 %v380
    %v463 = vunpack.c.l.b16 %v381
    %v464 = vunpack.c.h.b16 %v381
    %v465 = vunpack.c.l.b16 %v382
    %v466 = vunpack.c.h.b16 %v382
    %v467 = vunpack.c.l.b16 %v383
    %v468 = vunpack.c.h.b16 %v383
    %v469 = vunpack.c.l.b16 %v384
    %v470 = vunpack.c.h.b16 %v384
    %v471 = vunpack.c.l.b16 %v385
    %v472 = vunpack.c.h.b16 %v385
    %v473 = vunpack.c.l.b16 %v386
    %v474 = vunpack.c.h.b16 %v386
    %v475 = vunpack.c.l.b16 %v387
    %v476 = vunpack.c.h.b16 %v387
    %v477 = vunpack.c.l.b16 %v388
    %v478 = vunpack.c.h.b16 %v388
    %v479 = vunpack.c.l.b16 %v389
    %v480 = vunpack.c.h.b16 %v389
    %v481 = vunpack.c.l.b16 %v390
    %v482 = vunpack.c.h.b16 %v390
    %v483 = vunpack.c.l.b16 %v391
    %v484 = vunpack.c.h.b16 %v391
    %v485 = vunpack.c.l.b16 %v392
    %v486 = vunpack.c.h.b16 %v392
    %v487 = vunpack.c.l.b16 %v393
    %v488 = vunpack.c.h.b16 %v393
    %v489 = vunpack.c.l.b16 %v394
    %v490 = vunpack.c.h.b16 %v394
    %v491 = vpack.c.b16 %v429, %v427
    %v492 = vpack.c.b16 %v430, %v428
    %v493 = vpack.c.b16 %v433, %v431
    %v494 = vpack.c.b16 %v434, %v432
    %v495 = vpack.c.b16 %v437, %v435
    %v496 = vpack.c.b16 %v438, %v436
    %v497 = vpack.c.b16 %v441, %v439
    %v498 = vpack.c.b16 %v442, %v440
    %v499 = vpack.c.b16 %v445, %v443
    %v500 = vpack.c.b16 %v446, %v444
    %v501 = vpack.c.b16 %v449, %v447
    %v502 = vpack.c.b16 %v450, %v448
    %v503 = vpack.c.b16 %v453, %v451
    %v504 = vpack.c.b16 %v454, %v452
    %v505 = vpack.c.b16 %v457, %v455
    %v506 = vpack.c.b16 %v458, %v456
    %v507 = vpack.c.b16 %v461, %v459
    %v508 = vpack.c.b16 %v462, %v460
    %v509 = vpack.c.b16 %v465, %v463
    %v510 = vpack.c.b16 %v466, %v464
    %v511 = vpack.c.b16 %v469, %v467
    %v512 = vpack.c.b16 %v470, %v468
    %v513 = vpack.c.b16 %v473, %v471
    %v514 = vpack.c.b16 %v474, %v472
    %v515 = vpack.c.b16 %v477, %v475
    %v516 = vpack.c.b16 %v478, %v476
    %v517 = vpack.c.b16 %v481, %v479
    %v518 = vpack.c.b16 %v482, %v480
    %v519 = vpack.c.b16 %v485, %v483
    %v520 = vpack.c.b16 %v486, %v484
    %v521 = vpack.c.b16 %v489, %v487
    %v522 = vpack.c.b16 %v490, %v488
    %555 = vmatpush.bf16.msra.mxu0 %v505
    %556 = vmatpush.bf16.msra.mxu0 %v503
    %557 = vmatpush.bf16.msra.mxu0 %v501
    %558 = vmatpush.bf16.msra.mxu0 %v499
    %559 = vmatpush.bf16.msra.mxu0 %v497
    %560 = vmatpush.bf16.msra.mxu0 %v495
    %561 = vmatpush.bf16.msra.mxu0 %v493
    %562 = vmatpush.bf16.msra.mxu0 %v491
    %563 = vmatmul.bf16.gmra.mxu0 %v38
    %v564 = vpop.f32.mrf.mxu0
    %v565 = vadd.f32 0.0, %v564
    %v566 = vpop.f32.mrf.mxu0
    %567 = vdwg.mxu0
    %568 = vmatpush.bf16.msra.mxu0 %v521
    %569 = vmatpush.bf16.msra.mxu0 %v519
    %570 = vmatpush.bf16.msra.mxu0 %v517
    %571 = vmatpush.bf16.msra.mxu0 %v515
    %572 = vmatpush.bf16.msra.mxu0 %v513
    %573 = vmatpush.bf16.msra.mxu0 %v511
    %574 = vmatpush.bf16.msra.mxu0 %v509
    %575 = vmatpush.bf16.msra.mxu0 %v507
    %576 = vmatmul.bf16.gmra.mxu0 %v39
    %v577 = vpop.f32.mrf.mxu0
    %v578 = vadd.f32 %v565, %v577
    %v579 = vpop.f32.mrf.mxu0
    %580 = vdwg.mxu0
    %581 = vmatpush.bf16.msra.mxu0 %v506
    %582 = vmatpush.bf16.msra.mxu0 %v504
    %583 = vmatpush.bf16.msra.mxu0 %v502
    %584 = vmatpush.bf16.msra.mxu0 %v500
    %585 = vmatpush.bf16.msra.mxu0 %v498
    %586 = vmatpush.bf16.msra.mxu0 %v496
    %587 = vmatpush.bf16.msra.mxu0 %v494
    %588 = vmatpush.bf16.msra.mxu0 %v492
    %589 = vmatmul.bf16.gmra.mxu0 %v38
    %v590 = vpop.f32.mrf.mxu0
    %v591 = vadd.f32 0.0, %v590
    %v592 = vpop.f32.mrf.mxu0
    %593 = vdwg.mxu0
    %594 = vmatpush.bf16.msra.mxu0 %v522
    %595 = vmatpush.bf16.msra.mxu0 %v520
    %596 = vmatpush.bf16.msra.mxu0 %v518
    %597 = vmatpush.bf16.msra.mxu0 %v516
    %598 = vmatpush.bf16.msra.mxu0 %v514
    %599 = vmatpush.bf16.msra.mxu0 %v512
    %600 = vmatpush.bf16.msra.mxu0 %v510
    %601 = vmatpush.bf16.msra.mxu0 %v508
    %602 = vmatmul.bf16.gmra.mxu0 %v39
    %v603 = vpop.f32.mrf.mxu0
    %v604 = vadd.f32 %v591, %v603
    %v605 = vpop.f32.mrf.mxu0
    %606 = vdwg.mxu0
    %v607 = vrot.slane %v578, 4
    %v608 = vrot.slane %v604, 4
    %v609 = vadd.f32 %v578, %v607
    %v610 = vadd.f32 %v604, %v608
    %v611 = vadd.f32 %v609, %v610
    %612 = vadd.xlane.f32.xlu0 %v611
    %v613 = vpop.xlane.xlu0 %612
    %v614 = vrcp.pop 512.0
    %v615 = vmul.f32 512.0, %v614
    %v616 = vsub.f32 1.0, %v615
    %v617 = vmul.f32 %v614, %v616
    %v618 = vadd.f32 %v614, %v617
    %vm619 = vweird.f32 %v614
    %v620 = vsel %vm619, %v614, %v618
    %v621 = vmul.f32 %v613, %v620
    %v622 = vsub.f32 %v578, %v621
    %v623 = vsub.f32 %v604, %v621
    %v624 = vmul.f32 %v622, %v622
    %v625 = vmul.f32 %v623, %v623
    %v626 = vrot.slane %v624, 4
    %v627 = vrot.slane %v625, 4
    %v628 = vadd.f32 %v624, %v626
    %v629 = vadd.f32 %v625, %v627
    %v630 = vadd.f32 %v628, %v629
    %631 = vadd.xlane.f32.xlu0 %v630
    %v632 = vpop.xlane.xlu0 %631
    %v633 = vmul.f32 %v632, %v620
    %v634 = vadd.f32 %v633, 1e-05
    %v635 = vrsqrt.pop %v634
    %v636 = vmul.f32 %v635, %v634
    %v637 = vmul.f32 %v636, %v635
    %v638 = vmul.f32 0.5, %v637
    %v639 = vsub.f32 1.5, %v638
    %v640 = vmul.f32 %v635, %v639
    %vm641 = vweird.f32 %v634
    %vm642 = vweird.f32 %v635
    %vm643 = vmor %vm641, %vm642
    %v644 = vsel %vm643, %v635, %v640
    %v645 = vmul.f32 %v44, %v644
    %647 = vset.pattern.permute.xlu0 0
    %648 = vperm.xlu0 %647, %v645
    %v649 = vpop.permute.xlu0 %648
    %v651 = vmul.f32 %v622, %v649
    %v652 = vmul.f32 %v623, %v649
    %654 = vset.pattern.permute.xlu0 1
    %655 = vperm.xlu0 %654, %v44
    %v656 = vpop.permute.xlu0 %655
    %v658 = vadd.f32 %v651, %v656
    %v659 = vadd.f32 %v652, %v656
    %v660 = vmax.f32 %v658, 0.0
    %v661 = vmax.f32 %v659, 0.0
    %662 = vrot.lane.b32.xlu0 %v660, 34
    %v663 = vpop.permute.xlu0 %662
    %664 = vrot.lane.b32.xlu0 %v661, 34
    %v665 = vpop.permute.xlu0 %664
    %v666 = vsel %vm51, %v663, %v665
    %v667 = vsel %vm51, %v665, %v663
    %v668 = vld [vmem:[#allocation3 + $0x20] sm:$0xff]
    %v669 = vld [vmem:[#allocation3 + $0x28] sm:$0xff]
    %v670 = vmul.f32 %v667, %v668
    %v671 = vmul.f32 %v666, %v669
    %672 = vrot.lane.b32.xlu0 %v660, 33
    %v673 = vpop.permute.xlu0 %672
    %674 = vrot.lane.b32.xlu0 %v661, 33
    %v675 = vpop.permute.xlu0 %674
    %v676 = vsel %vm62, %v673, %v675
    %v677 = vsel %vm62, %v675, %v673
    %v678 = vld [vmem:[#allocation3 + $0x30] sm:$0xff]
    %v679 = vld [vmem:[#allocation3 + $0x38] sm:$0xff]
    %v680 = vmul.f32 %v677, %v678
    %v681 = vmul.f32 %v676, %v679
    %v682 = vpack.c.bf16 %v671, %v670
    %v683 = vpack.c.bf16 %v681, %v680
    %684 = vst [vmem:[#allocation2] sm:$0xff] %v682
    %685 = vst [vmem:[#allocation2 + $0x8] sm:$0xff] %v683
    %686 = vrot.lane.b32.xlu0 %v660, 32
    %v687 = vpop.permute.xlu0 %686
    %688 = vrot.lane.b32.xlu0 %v661, 32
    %v689 = vpop.permute.xlu0 %688
    %v690 = vsel %vm77, %v687, %v689
    %v691 = vsel %vm77, %v689, %v687
    %v692 = vld [vmem:[#allocation3 + $0x40] sm:$0xff]
    %v693 = vld [vmem:[#allocation3 + $0x48] sm:$0xff]
    %v694 = vmul.f32 %v691, %v692
    %v695 = vmul.f32 %v690, %v693
    %696 = vrot.lane.b32.xlu0 %v660, 31
    %v697 = vpop.permute.xlu0 %696
    %698 = vrot.lane.b32.xlu0 %v661, 31
    %v699 = vpop.permute.xlu0 %698
    %v700 = vsel %vm88, %v697, %v699
    %v701 = vsel %vm88, %v699, %v697
    %v702 = vld [vmem:[#allocation3 + $0x50] sm:$0xff]
    %v703 = vld [vmem:[#allocation3 + $0x58] sm:$0xff]
    %v704 = vmul.f32 %v701, %v702
    %v705 = vmul.f32 %v700, %v703
    %v706 = vpack.c.bf16 %v695, %v694
    %v707 = vpack.c.bf16 %v705, %v704
    %708 = vst [vmem:[#allocation2 + $0x10] sm:$0xff] %v706
    %709 = vst [vmem:[#allocation2 + $0x18] sm:$0xff] %v707
    %710 = vrot.lane.b32.xlu0 %v660, 30
    %v711 = vpop.permute.xlu0 %710
    %712 = vrot.lane.b32.xlu0 %v661, 30
    %v713 = vpop.permute.xlu0 %712
    %v714 = vsel %vm103, %v711, %v713
    %v715 = vsel %vm103, %v713, %v711
    %v716 = vld [vmem:[#allocation3 + $0x60] sm:$0xff]
    %v717 = vld [vmem:[#allocation3 + $0x68] sm:$0xff]
    %v718 = vmul.f32 %v715, %v716
    %v719 = vmul.f32 %v714, %v717
    %720 = vrot.lane.b32.xlu0 %v660, 18
    %v721 = vpop.permute.xlu0 %720
    %722 = vrot.lane.b32.xlu0 %v661, 18
    %v723 = vpop.permute.xlu0 %722
    %v724 = vsel %vm114, %v721, %v723
    %v725 = vsel %vm114, %v723, %v721
    %v726 = vld [vmem:[#allocation3 + $0x70] sm:$0xff]
    %v727 = vld [vmem:[#allocation3 + $0x78] sm:$0xff]
    %v728 = vmul.f32 %v725, %v726
    %v729 = vmul.f32 %v724, %v727
    %v730 = vpack.c.bf16 %v719, %v718
    %v731 = vpack.c.bf16 %v729, %v728
    %732 = vst [vmem:[#allocation2 + $0x20] sm:$0xff] %v730
    %733 = vst [vmem:[#allocation2 + $0x28] sm:$0xff] %v731
    %734 = vrot.lane.b32.xlu0 %v660, 17
    %v735 = vpop.permute.xlu0 %734
    %736 = vrot.lane.b32.xlu0 %v661, 17
    %v737 = vpop.permute.xlu0 %736
    %v738 = vsel %vm129, %v735, %v737
    %v739 = vsel %vm129, %v737, %v735
    %v740 = vld [vmem:[#allocation3 + $0x80] sm:$0xff]
    %v741 = vld [vmem:[#allocation3 + $0x88] sm:$0xff]
    %v742 = vmul.f32 %v739, %v740
    %v743 = vmul.f32 %v738, %v741
    %744 = vrot.lane.b32.xlu0 %v660, 16
    %v745 = vpop.permute.xlu0 %744
    %746 = vrot.lane.b32.xlu0 %v661, 16
    %v747 = vpop.permute.xlu0 %746
    %v748 = vsel %vm140, %v745, %v747
    %v749 = vsel %vm140, %v747, %v745
    %v750 = vld [vmem:[#allocation3 + $0x90] sm:$0xff]
    %v751 = vld [vmem:[#allocation3 + $0x98] sm:$0xff]
    %v752 = vmul.f32 %v749, %v750
    %v753 = vmul.f32 %v748, %v751
    %v754 = vpack.c.bf16 %v743, %v742
    %v755 = vpack.c.bf16 %v753, %v752
    %756 = vst [vmem:[#allocation2 + $0x30] sm:$0xff] %v754
    %757 = vst [vmem:[#allocation2 + $0x38] sm:$0xff] %v755
    %758 = vrot.lane.b32.xlu0 %v660, 15
    %v759 = vpop.permute.xlu0 %758
    %760 = vrot.lane.b32.xlu0 %v661, 15
    %v761 = vpop.permute.xlu0 %760
    %v762 = vsel %vm155, %v759, %v761
    %v763 = vsel %vm155, %v761, %v759
    %v764 = vld [vmem:[#allocation3 + $0xa0] sm:$0xff]
    %v765 = vld [vmem:[#allocation3 + $0xa8] sm:$0xff]
    %v766 = vmul.f32 %v763, %v764
    %v767 = vmul.f32 %v762, %v765
    %768 = vrot.lane.b32.xlu0 %v660, 14
    %v769 = vpop.permute.xlu0 %768
    %770 = vrot.lane.b32.xlu0 %v661, 14
    %v771 = vpop.permute.xlu0 %770
    %v772 = vsel %vm166, %v769, %v771
    %v773 = vsel %vm166, %v771, %v769
    %v774 = vld [vmem:[#allocation3 + $0xb0] sm:$0xff]
    %v775 = vld [vmem:[#allocation3 + $0xb8] sm:$0xff]
    %v776 = vmul.f32 %v773, %v774
    %v777 = vmul.f32 %v772, %v775
    %v778 = vpack.c.bf16 %v767, %v766
    %v779 = vpack.c.bf16 %v777, %v776
    %780 = vst [vmem:[#allocation2 + $0x40] sm:$0xff] %v778
    %781 = vst [vmem:[#allocation2 + $0x48] sm:$0xff] %v779
    %782 = vrot.lane.b32.xlu0 %v660, 2
    %v783 = vpop.permute.xlu0 %782
    %784 = vrot.lane.b32.xlu0 %v661, 2
    %v785 = vpop.permute.xlu0 %784
    %v786 = vsel %vm181, %v783, %v785
    %v787 = vsel %vm181, %v785, %v783
    %v788 = vld [vmem:[#allocation3 + $0xc0] sm:$0xff]
    %v789 = vld [vmem:[#allocation3 + $0xc8] sm:$0xff]
    %v790 = vmul.f32 %v787, %v788
    %v791 = vmul.f32 %v786, %v789
    %792 = vrot.lane.b32.xlu0 %v660, 1
    %v793 = vpop.permute.xlu0 %792
    %794 = vrot.lane.b32.xlu0 %v661, 1
    %v795 = vpop.permute.xlu0 %794
    %v796 = vsel %vm192, %v793, %v795
    %v797 = vsel %vm192, %v795, %v793
    %v798 = vld [vmem:[#allocation3 + $0xd0] sm:$0xff]
    %v799 = vld [vmem:[#allocation3 + $0xd8] sm:$0xff]
    %v800 = vmul.f32 %v797, %v798
    %v801 = vmul.f32 %v796, %v799
    %v802 = vpack.c.bf16 %v791, %v790
    %v803 = vpack.c.bf16 %v801, %v800
    %804 = vst [vmem:[#allocation2 + $0x50] sm:$0xff] %v802
    %805 = vst [vmem:[#allocation2 + $0x58] sm:$0xff] %v803
    %806 = vrot.lane.b32.xlu0 %v660, 127
    %v807 = vpop.permute.xlu0 %806
    %808 = vrot.lane.b32.xlu0 %v661, 127
    %v809 = vpop.permute.xlu0 %808
    %v810 = vsel %vm207, %v807, %v809
    %v811 = vsel %vm207, %v809, %v807
    %v812 = vld [vmem:[#allocation3 + $0xf0] sm:$0xff]
    %v813 = vld [vmem:[#allocation3 + $0xf8] sm:$0xff]
    %v814 = vmul.f32 %v810, %v812
    %v815 = vmul.f32 %v811, %v813
    %v816 = vpack.c.bf16 %v661, %v660
    %v817 = vpack.c.bf16 %v815, %v814
    %818 = vst [vmem:[#allocation2 + $0x60] sm:$0xff] %v816
    %819 = vst [vmem:[#allocation2 + $0x68] sm:$0xff] %v817
    %820 = vrot.lane.b32.xlu0 %v660, 126
    %v821 = vpop.permute.xlu0 %820
    %822 = vrot.lane.b32.xlu0 %v661, 126
    %v823 = vpop.permute.xlu0 %822
    %v824 = vsel %vm222, %v821, %v823
    %v825 = vsel %vm222, %v823, %v821
    %v826 = vld [vmem:[#allocation3 + $0x100] sm:$0xff]
    %v827 = vld [vmem:[#allocation3 + $0x108] sm:$0xff]
    %v828 = vmul.f32 %v824, %v826
    %v829 = vmul.f32 %v825, %v827
    %830 = vrot.lane.b32.xlu0 %v660, 114
    %v831 = vpop.permute.xlu0 %830
    %832 = vrot.lane.b32.xlu0 %v661, 114
    %v833 = vpop.permute.xlu0 %832
    %v834 = vsel %vm233, %v831, %v833
    %v835 = vsel %vm233, %v833, %v831
    %v836 = vld [vmem:[#allocation3 + $0x110] sm:$0xff]
    %v837 = vld [vmem:[#allocation3 + $0x118] sm:$0xff]
    %v838 = vmul.f32 %v834, %v836
    %v839 = vmul.f32 %v835, %v837
    %v840 = vpack.c.bf16 %v829, %v828
    %v841 = vpack.c.bf16 %v839, %v838
    %842 = vst [vmem:[#allocation2 + $0x70] sm:$0xff] %v840
    %843 = vst [vmem:[#allocation2 + $0x78] sm:$0xff] %v841
    %844 = vrot.lane.b32.xlu0 %v660, 113
    %v845 = vpop.permute.xlu0 %844
    %846 = vrot.lane.b32.xlu0 %v661, 113
    %v847 = vpop.permute.xlu0 %846
    %v848 = vsel %vm248, %v845, %v847
    %v849 = vsel %vm248, %v847, %v845
    %v850 = vld [vmem:[#allocation3 + $0x120] sm:$0xff]
    %v851 = vld [vmem:[#allocation3 + $0x128] sm:$0xff]
    %v852 = vmul.f32 %v848, %v850
    %v853 = vmul.f32 %v849, %v851
    %854 = vrot.lane.b32.xlu0 %v660, 112
    %v855 = vpop.permute.xlu0 %854
    %856 = vrot.lane.b32.xlu0 %v661, 112
    %v857 = vpop.permute.xlu0 %856
    %v858 = vsel %vm259, %v855, %v857
    %v859 = vsel %vm259, %v857, %v855
    %v860 = vld [vmem:[#allocation3 + $0x130] sm:$0xff]
    %v861 = vld [vmem:[#allocation3 + $0x138] sm:$0xff]
    %v862 = vmul.f32 %v858, %v860
    %v863 = vmul.f32 %v859, %v861
    %v864 = vpack.c.bf16 %v853, %v852
    %v865 = vpack.c.bf16 %v863, %v862
    %866 = vst [vmem:[#allocation2 + $0x80] sm:$0xff] %v864
    %867 = vst [vmem:[#allocation2 + $0x88] sm:$0xff] %v865
    %868 = vrot.lane.b32.xlu0 %v660, 111
    %v869 = vpop.permute.xlu0 %868
    %870 = vrot.lane.b32.xlu0 %v661, 111
    %v871 = vpop.permute.xlu0 %870
    %v872 = vsel %vm274, %v869, %v871
    %v873 = vsel %vm274, %v871, %v869
    %v874 = vld [vmem:[#allocation3 + $0x140] sm:$0xff]
    %v875 = vld [vmem:[#allocation3 + $0x148] sm:$0xff]
    %v876 = vmul.f32 %v872, %v874
    %v877 = vmul.f32 %v873, %v875
    %878 = vrot.lane.b32.xlu0 %v660, 110
    %v879 = vpop.permute.xlu0 %878
    %880 = vrot.lane.b32.xlu0 %v661, 110
    %v881 = vpop.permute.xlu0 %880
    %v882 = vsel %vm285, %v879, %v881
    %v883 = vsel %vm285, %v881, %v879
    %v884 = vld [vmem:[#allocation3 + $0x150] sm:$0xff]
    %v885 = vld [vmem:[#allocation3 + $0x158] sm:$0xff]
    %v886 = vmul.f32 %v882, %v884
    %v887 = vmul.f32 %v883, %v885
    %v888 = vpack.c.bf16 %v877, %v876
    %v889 = vpack.c.bf16 %v887, %v886
    %890 = vst [vmem:[#allocation2 + $0x90] sm:$0xff] %v888
    %891 = vst [vmem:[#allocation2 + $0x98] sm:$0xff] %v889
    %892 = vrot.lane.b32.xlu0 %v660, 98
    %v893 = vpop.permute.xlu0 %892
    %894 = vrot.lane.b32.xlu0 %v661, 98
    %v895 = vpop.permute.xlu0 %894
    %v896 = vsel %vm300, %v893, %v895
    %v897 = vsel %vm300, %v895, %v893
    %v898 = vld [vmem:[#allocation3 + $0x160] sm:$0xff]
    %v899 = vld [vmem:[#allocation3 + $0x168] sm:$0xff]
    %v900 = vmul.f32 %v896, %v898
    %v901 = vmul.f32 %v897, %v899
    %902 = vrot.lane.b32.xlu0 %v660, 97
    %v903 = vpop.permute.xlu0 %902
    %904 = vrot.lane.b32.xlu0 %v661, 97
    %v905 = vpop.permute.xlu0 %904
    %v906 = vsel %vm311, %v903, %v905
    %v907 = vsel %vm311, %v905, %v903
    %v908 = vld [vmem:[#allocation3 + $0x170] sm:$0xff]
    %v909 = vld [vmem:[#allocation3 + $0x178] sm:$0xff]
    %v910 = vmul.f32 %v906, %v908
    %v911 = vmul.f32 %v907, %v909
    %v912 = vpack.c.bf16 %v901, %v900
    %v913 = vpack.c.bf16 %v911, %v910
    %914 = vst [vmem:[#allocation2 + $0xa0] sm:$0xff] %v912
    %915 = vst [vmem:[#allocation2 + $0xa8] sm:$0xff] %v913
    %916 = vrot.lane.b32.xlu0 %v660, 96
    %v917 = vpop.permute.xlu0 %916
    %918 = vrot.lane.b32.xlu0 %v661, 96
    %v919 = vpop.permute.xlu0 %918
    %v920 = vsel %vm326, %v917, %v919
    %v921 = vsel %vm326, %v919, %v917
    %v922 = vld [vmem:[#allocation3 + $0x180] sm:$0xff]
    %v923 = vld [vmem:[#allocation3 + $0x188] sm:$0xff]
    %v924 = vmul.f32 %v920, %v922
    %v925 = vmul.f32 %v921, %v923
    %926 = vrot.lane.b32.xlu0 %v660, 95
    %v927 = vpop.permute.xlu0 %926
    %928 = vrot.lane.b32.xlu0 %v661, 95
    %v929 = vpop.permute.xlu0 %928
    %v930 = vsel %vm337, %v927, %v929
    %v931 = vsel %vm337, %v929, %v927
    %v932 = vld [vmem:[#allocation3 + $0x190] sm:$0xff]
    %v933 = vld [vmem:[#allocation3 + $0x198] sm:$0xff]
    %v934 = vmul.f32 %v930, %v932
    %v935 = vmul.f32 %v931, %v933
    %v936 = vpack.c.bf16 %v925, %v924
    %v937 = vpack.c.bf16 %v935, %v934
    %938 = vst [vmem:[#allocation2 + $0xb0] sm:$0xff] %v936
    %939 = vst [vmem:[#allocation2 + $0xb8] sm:$0xff] %v937
    %940 = vrot.lane.b32.xlu0 %v660, 94
    %v941 = vpop.permute.xlu0 %940
    %942 = vrot.lane.b32.xlu0 %v661, 94
    %v943 = vpop.permute.xlu0 %942
    %v944 = vsel %vm352, %v941, %v943
    %v945 = vsel %vm352, %v943, %v941
    %v946 = vld [vmem:[#allocation3 + $0x1a0] sm:$0xff]
    %v947 = vld [vmem:[#allocation3 + $0x1a8] sm:$0xff]
    %v948 = vmul.f32 %v944, %v946
    %v949 = vmul.f32 %v945, %v947
    %v950 = vpack.c.bf16 %v949, %v948
    %951 = vst [vmem:[#allocation2 + $0xc0] sm:$0xff] %v950
    %952 = vst [vmem:[#allocation2 + $0xc8] sm:$0xff] %v360
    %v953 = vld [vmem:[#allocation2] sm:$0xff]
    %v954 = vld [vmem:[#allocation2 + $0x8] sm:$0xff]
    %v955 = vld [vmem:[#allocation2 + $0x10] sm:$0xff]
    %v956 = vld [vmem:[#allocation2 + $0x18] sm:$0xff]
    %v957 = vld [vmem:[#allocation2 + $0x20] sm:$0xff]
    %v958 = vld [vmem:[#allocation2 + $0x28] sm:$0xff]
    %v959 = vld [vmem:[#allocation2 + $0x30] sm:$0xff]
    %v960 = vld [vmem:[#allocation2 + $0x38] sm:$0xff]
    %v961 = vld [vmem:[#allocation2 + $0x40] sm:$0xff]
    %v962 = vld [vmem:[#allocation2 + $0x48] sm:$0xff]
    %v963 = vld [vmem:[#allocation2 + $0x50] sm:$0xff]
    %v964 = vld [vmem:[#allocation2 + $0x58] sm:$0xff]
    %v965 = vld [vmem:[#allocation2 + $0x60] sm:$0xff]
    %v966 = vld [vmem:[#allocation2 + $0x68] sm:$0xff]
    %v967 = vld [vmem:[#allocation2 + $0x70] sm:$0xff]
    %v968 = vld [vmem:[#allocation2 + $0x78] sm:$0xff]
    %v969 = vld [vmem:[#allocation2 + $0x80] sm:$0xff]
    %v970 = vld [vmem:[#allocation2 + $0x88] sm:$0xff]
    %v971 = vld [vmem:[#allocation2 + $0x90] sm:$0xff]
    %v972 = vld [vmem:[#allocation2 + $0x98] sm:$0xff]
    %v973 = vld [vmem:[#allocation2 + $0xa0] sm:$0xff]
    %v974 = vld [vmem:[#allocation2 + $0xa8] sm:$0xff]
    %v975 = vld [vmem:[#allocation2 + $0xb0] sm:$0xff]
    %v976 = vld [vmem:[#allocation2 + $0xb8] sm:$0xff]
    %v977 = vld [vmem:[#allocation2 + $0xc0] sm:$0xff]
    %v978 = vld [vmem:[#allocation2 + $0xc8] sm:$0xff]
    %v979 = vld [vmem:[#allocation2 + $0xd0] sm:$0xff]
    %v980 = vld [vmem:[#allocation2 + $0xd8] sm:$0xff]
    %v981 = vld [vmem:[#allocation2 + $0xe0] sm:$0xff]
    %v982 = vld [vmem:[#allocation2 + $0xe8] sm:$0xff]
    %v983 = vld [vmem:[#allocation2 + $0xf0] sm:$0xff]
    %v984 = vld [vmem:[#allocation2 + $0xf8] sm:$0xff]
    %v1017 = vunpack.c.l.b16 %v953
    %v1018 = vunpack.c.h.b16 %v953
    %v1019 = vunpack.c.l.b16 %v954
    %v1020 = vunpack.c.h.b16 %v954
    %v1021 = vunpack.c.l.b16 %v955
    %v1022 = vunpack.c.h.b16 %v955
    %v1023 = vunpack.c.l.b16 %v956
    %v1024 = vunpack.c.h.b16 %v956
    %v1025 = vunpack.c.l.b16 %v957
    %v1026 = vunpack.c.h.b16 %v957
    %v1027 = vunpack.c.l.b16 %v958
    %v1028 = vunpack.c.h.b16 %v958
    %v1029 = vunpack.c.l.b16 %v959
    %v1030 = vunpack.c.h.b16 %v959
    %v1031 = vunpack.c.l.b16 %v960
    %v1032 = vunpack.c.h.b16 %v960
    %v1033 = vunpack.c.l.b16 %v961
    %v1034 = vunpack.c.h.b16 %v961
    %v1035 = vunpack.c.l.b16 %v962
    %v1036 = vunpack.c.h.b16 %v962
    %v1037 = vunpack.c.l.b16 %v963
    %v1038 = vunpack.c.h.b16 %v963
    %v1039 = vunpack.c.l.b16 %v964
    %v1040 = vunpack.c.h.b16 %v964
    %v1041 = vunpack.c.l.b16 %v965
    %v1042 = vunpack.c.h.b16 %v965
    %v1043 = vunpack.c.l.b16 %v966
    %v1044 = vunpack.c.h.b16 %v966
    %v1045 = vunpack.c.l.b16 %v967
    %v1046 = vunpack.c.h.b16 %v967
    %v1047 = vunpack.c.l.b16 %v968
    %v1048 = vunpack.c.h.b16 %v968
    %v1049 = vunpack.c.l.b16 %v969
    %v1050 = vunpack.c.h.b16 %v969
    %v1051 = vunpack.c.l.b16 %v970
    %v1052 = vunpack.c.h.b16 %v970
    %v1053 = vunpack.c.l.b16 %v971
    %v1054 = vunpack.c.h.b16 %v971
    %v1055 = vunpack.c.l.b16 %v972
    %v1056 = vunpack.c.h.b16 %v972
    %v1057 = vunpack.c.l.b16 %v973
    %v1058 = vunpack.c.h.b16 %v973
    %v1059 = vunpack.c.l.b16 %v974
    %v1060 = vunpack.c.h.b16 %v974
    %v1061 = vunpack.c.l.b16 %v975
    %v1062 = vunpack.c.h.b16 %v975
    %v1063 = vunpack.c.l.b16 %v976
    %v1064 = vunpack.c.h.b16 %v976
    %v1065 = vunpack.c.l.b16 %v977
    %v1066 = vunpack.c.h.b16 %v977
    %v1067 = vunpack.c.l.b16 %v978
    %v1068 = vunpack.c.h.b16 %v978
    %v1069 = vunpack.c.l.b16 %v979
    %v1070 = vunpack.c.h.b16 %v979
    %v1071 = vunpack.c.l.b16 %v980
    %v1072 = vunpack.c.h.b16 %v980
    %v1073 = vunpack.c.l.b16 %v981
    %v1074 = vunpack.c.h.b16 %v981
    %v1075 = vunpack.c.l.b16 %v982
    %v1076 = vunpack.c.h.b16 %v982
    %v1077 = vunpack.c.l.b16 %v983
    %v1078 = vunpack.c.h.b16 %v983
    %v1079 = vunpack.c.l.b16 %v984
    %v1080 = vunpack.c.h.b16 %v984
    %v1081 = vpack.c.b16 %v1019, %v1017
    %v1082 = vpack.c.b16 %v1020, %v1018
    %v1083 = vpack.c.b16 %v1023, %v1021
    %v1084 = vpack.c.b16 %v1024, %v1022
    %v1085 = vpack.c.b16 %v1027, %v1025
    %v1086 = vpack.c.b16 %v1028, %v1026
    %v1087 = vpack.c.b16 %v1031, %v1029
    %v1088 = vpack.c.b16 %v1032, %v1030
    %v1089 = vpack.c.b16 %v1035, %v1033
    %v1090 = vpack.c.b16 %v1036, %v1034
    %v1091 = vpack.c.b16 %v1039, %v1037
    %v1092 = vpack.c.b16 %v1040, %v1038
    %v1093 = vpack.c.b16 %v1043, %v1041
    %v1094 = vpack.c.b16 %v1044, %v1042
    %v1095 = vpack.c.b16 %v1047, %v1045
    %v1096 = vpack.c.b16 %v1048, %v1046
    %v1097 = vpack.c.b16 %v1051, %v1049
    %v1098 = vpack.c.b16 %v1052, %v1050
    %v1099 = vpack.c.b16 %v1055, %v1053
    %v1100 = vpack.c.b16 %v1056, %v1054
    %v1101 = vpack.c.b16 %v1059, %v1057
    %v1102 = vpack.c.b16 %v1060, %v1058
    %v1103 = vpack.c.b16 %v1063, %v1061
    %v1104 = vpack.c.b16 %v1064, %v1062
    %v1105 = vpack.c.b16 %v1067, %v1065
    %v1106 = vpack.c.b16 %v1068, %v1066
    %v1107 = vpack.c.b16 %v1071, %v1069
    %v1108 = vpack.c.b16 %v1072, %v1070
    %v1109 = vpack.c.b16 %v1075, %v1073
    %v1110 = vpack.c.b16 %v1076, %v1074
    %v1111 = vpack.c.b16 %v1079, %v1077
    %v1112 = vpack.c.b16 %v1080, %v1078
    %1145 = vmatpush.bf16.msra.mxu0 %v1095
    %1146 = vmatpush.bf16.msra.mxu0 %v1093
    %1147 = vmatpush.bf16.msra.mxu0 %v1091
    %1148 = vmatpush.bf16.msra.mxu0 %v1089
    %1149 = vmatpush.bf16.msra.mxu0 %v1087
    %1150 = vmatpush.bf16.msra.mxu0 %v1085
    %1151 = vmatpush.bf16.msra.mxu0 %v1083
    %1152 = vmatpush.bf16.msra.mxu0 %v1081
    %1153 = vmatmul.bf16.gmra.mxu0 %v42
    %v1154 = vpop.f32.mrf.mxu0
    %v1155 = vadd.f32 0.0, %v1154
    %v1156 = vpop.f32.mrf.mxu0
    %1157 = vdwg.mxu0
    %1158 = vmatpush.bf16.msra.mxu0 %v1111
    %1159 = vmatpush.bf16.msra.mxu0 %v1109
    %1160 = vmatpush.bf16.msra.mxu0 %v1107
    %1161 = vmatpush.bf16.msra.mxu0 %v1105
    %1162 = vmatpush.bf16.msra.mxu0 %v1103
    %1163 = vmatpush.bf16.msra.mxu0 %v1101
    %1164 = vmatpush.bf16.msra.mxu0 %v1099
    %1165 = vmatpush.bf16.msra.mxu0 %v1097
    %1166 = vmatmul.bf16.gmra.mxu0 %v43
    %v1167 = vpop.f32.mrf.mxu0
    %v1168 = vadd.f32 %v1155, %v1167
    %v1169 = vpop.f32.mrf.mxu0
    %1170 = vdwg.mxu0
    %1171 = vmatpush.bf16.msra.mxu0 %v1096
    %1172 = vmatpush.bf16.msra.mxu0 %v1094
    %1173 = vmatpush.bf16.msra.mxu0 %v1092
    %1174 = vmatpush.bf16.msra.mxu0 %v1090
    %1175 = vmatpush.bf16.msra.mxu0 %v1088
    %1176 = vmatpush.bf16.msra.mxu0 %v1086
    %1177 = vmatpush.bf16.msra.mxu0 %v1084
    %1178 = vmatpush.bf16.msra.mxu0 %v1082
    %1179 = vmatmul.bf16.gmra.mxu0 %v42
    %v1180 = vpop.f32.mrf.mxu0
    %v1181 = vadd.f32 0.0, %v1180
    %v1182 = vpop.f32.mrf.mxu0
    %1183 = vdwg.mxu0
    %1184 = vmatpush.bf16.msra.mxu0 %v1112
    %1185 = vmatpush.bf16.msra.mxu0 %v1110
    %1186 = vmatpush.bf16.msra.mxu0 %v1108
    %1187 = vmatpush.bf16.msra.mxu0 %v1106
    %1188 = vmatpush.bf16.msra.mxu0 %v1104
    %1189 = vmatpush.bf16.msra.mxu0 %v1102
    %1190 = vmatpush.bf16.msra.mxu0 %v1100
    %1191 = vmatpush.bf16.msra.mxu0 %v1098
    %1192 = vmatmul.bf16.gmra.mxu0 %v43
    %v1193 = vpop.f32.mrf.mxu0
    %v1194 = vadd.f32 %v1181, %v1193
    %v1195 = vpop.f32.mrf.mxu0
    %1196 = vdwg.mxu0
    %v1197 = vrot.slane %v1168, 4
    %v1198 = vrot.slane %v1194, 4
    %v1199 = vadd.f32 %v1168, %v1197
    %v1200 = vadd.f32 %v1194, %v1198
    %v1201 = vadd.f32 %v1199, %v1200
    %1202 = vadd.xlane.f32.xlu0 %v1201
    %v1203 = vpop.xlane.xlu0 %1202
    %v1204 = vmul.f32 %v1203, %v620
    %v1205 = vsub.f32 %v1168, %v1204
    %v1206 = vsub.f32 %v1194, %v1204
    %v1207 = vmul.f32 %v1205, %v1205
    %v1208 = vmul.f32 %v1206, %v1206
    %v1209 = vrot.slane %v1207, 4
    %v1210 = vrot.slane %v1208, 4
    %v1211 = vadd.f32 %v1207, %v1209
    %v1212 = vadd.f32 %v1208, %v1210
    %v1213 = vadd.f32 %v1211, %v1212
    %1214 = vadd.xlane.f32.xlu0 %v1213
    %v1215 = vpop.xlane.xlu0 %1214
    %v1216 = vmul.f32 %v1215, %v620
    %v1217 = vadd.f32 %v1216, 1e-05
    %v1218 = vrsqrt.pop %v1217
    %v1219 = vmul.f32 %v1218, %v1217
    %v1220 = vmul.f32 %v1219, %v1218
    %v1221 = vmul.f32 0.5, %v1220
    %v1222 = vsub.f32 1.5, %v1221
    %v1223 = vmul.f32 %v1218, %v1222
    %vm1224 = vweird.f32 %v1217
    %vm1225 = vweird.f32 %v1218
    %vm1226 = vmor %vm1224, %vm1225
    %v1227 = vsel %vm1226, %v1218, %v1223
    %v1228 = vmul.f32 %v44, %v1227
    %1230 = vset.pattern.permute.xlu0 2
    %1231 = vperm.xlu0 %1230, %v1228
    %v1232 = vpop.permute.xlu0 %1231
    %v1234 = vmul.f32 %v1205, %v1232
    %v1235 = vmul.f32 %v1206, %v1232
    %1236 = vset.pattern.permute.xlu0 3
    %1237 = vperm.xlu0 %1236, %v44
    %v1238 = vpop.permute.xlu0 %1237
    %v1240 = vadd.f32 %v1234, %v1238
    %v1241 = vadd.f32 %v1235, %v1238
    %v1242 = vadd.f32 %v1240, %v28
    %v1243 = vadd.f32 %v1241, %v29
    %1244 = vst [vmem:[%s2] sm:$0xff] %v1242
    %1245 = vst [vmem:[%s2 + $0x8] sm:$0xff] %v1243
    // Predicated region
    $region14: #{resblock2d.1} parent=1 // pred_check
      _
    $region15: #{resblock2d.1} parent=1 // pred_check_branch
      %1247 = sbr.rel (0) target = $region17
    $region16: #{resblock2d.1} parent=1 // pred_region
      _
    $region17: #{resblock2d.1} parent=1 // pred_fallthru
      _
    // Predicated region
    $region18: #{resblock2d.1} parent=1 // pred_check
      _
    $region19: #{resblock2d.1} parent=1 // pred_check_branch
      %1249 = sbr.rel (0) target = $region21
    $region20: #{resblock2d.1} parent=1 // pred_region
      _
    $region21: #{resblock2d.1} parent=1 // pred_fallthru
      _
    %1250 = vsyncpa [#allocation4], 1

</llo_original>
